<compile_context>
chip_gen: v7x
topology: tpu7x:2x2x1
jax: 0.10.0
libtpu: 0.0.40
codegen_flags: <defaults>
</compile_context>

<pallas_src>
import functools

import jax
import jax.numpy as jnp
from jax.experimental import pallas as pl
from jax.experimental.pallas import tpu as pltpu

C_IN = 47      # conv  : 47 -> 9   (1x1)
C_MID = 9      # conv1 :  9 -> 1   (1x1)
C_EXP = 47     # conv2 :  1 -> 47  (1x1)
C_OUT = 32     # conv4 :  1 -> 32  (3x3, valid)


# ---------------------------------------------------------------------------
# Fused kernel: B_blk batch elements per grid step, (C, H*W) layout throughout.
# ---------------------------------------------------------------------------
def _fused_kernel(x_ref, w0_ref, pk_ref, w4b_ref, o_ref, pad_ref, *,
                  width, hw_out):
    """x_ref   : (B_blk, 47, HW)
       w0_ref  : (9, 47)        conv 1x1 weight (MXU matmul)
       pk_ref  : (47, 6)        col0=b0(9) col1=w1(9) col2=w2 col3=b2 col4=w3
                                col5=[b1, b3, 0...]
       w4b_ref : (32, 10)       cols 0..8 = conv4 taps (k = di*3+dj), col 9 = b4
       o_ref   : (B_blk, 32, (H-2)*W)   row-cropped, lane-dense output
       pad_ref : (1, HW + 2W + 2)       VMEM scratch: v7 plus a zero tail
    """
    hi = jax.lax.Precision.HIGHEST
    b_blk, _, hw = x_ref.shape

    pk = pk_ref[...]
    b0 = pk[:C_MID, 0:1]           # (9, 1)
    w1 = pk[:C_MID, 1:2]           # (9, 1)
    w2 = pk[:, 2:3]                # (47, 1)
    b2 = pk[:, 3:4]                # (47, 1)
    w3 = pk[:, 4:5]                # (47, 1)
    b1 = pk[0:1, 5:6]              # (1, 1) true scalar
    b3 = pk[1:2, 5:6]              # (1, 1) true scalar
    w0 = w0_ref[...]               # (9, 47)
    w4b = w4b_ref[...]             # (32, 10)

    # Re-zero the scratch each step: the 2W+2 tail reads become deterministic
    # zeros (garbage there would only land in the cropped last 2 columns, but
    # keep it clean and megacore-safe).  Cost: a handful of VMEM vector stores.
    pad_ref[...] = jnp.zeros_like(pad_ref)

    for b in range(b_blk):                                   # small static unroll
        x = x_ref[b]                                          # (47, HW)

        # conv (47->9) + tanh : MXU matmul (channels on sublanes, pixels on lanes)
        v1 = jnp.tanh(jnp.dot(w0, x, precision=hi,
                              preferred_element_type=jnp.float32) + b0)   # (9, HW)
        # conv1 (9->1) + tanh : sublane reduction
        v3 = jnp.tanh(jnp.sum(v1 * w1, axis=0, keepdims=True) + b1)       # (1, HW)
        # conv2 (1->47) + tanh : sublane broadcast, lane-dense tanh (dominant EUP)
        v5 = jnp.tanh(v3 * w2 + b2)                                       # (47, HW)
        # conv3 (47->1) + tanh : sublane reduction
        v7 = jnp.tanh(jnp.sum(v5 * w3, axis=0, keepdims=True) + b3)       # (1, HW)

        # conv4: 3x3 valid conv on the row-major flat plane as 9 FMA taps.
        # Tap (di,dj) == flat lane shift di*W + dj; positions that wrap a row
        # boundary or read the zero tail fall only in the 2 columns the
        # wrapper crops.
        pad_ref[0:1, :hw] = v7
        vp = pad_ref[...]                                                 # (1, HW+2W+2)
        acc = jnp.broadcast_to(w4b[:, 9:10], (C_OUT, hw_out))             # + b4
        for k in range(9):
            di, dj = divmod(k, 3)
            off = di * width + dj
            acc = acc + w4b[:, k:k + 1] * vp[:, off:off + hw_out]
        o_ref[b] = acc                                                    # lane-dense store


# ---------------------------------------------------------------------------
# Parameter packing (tiny, fused under jit) and wrapper.
# ---------------------------------------------------------------------------
def _pack_params(params):
    w0, b0, w1, b1, w2, b2, w3, b3, w4, b4 = params
    pk = jnp.zeros((C_EXP, 6), jnp.float32)
    pk = pk.at[:C_MID, 0].set(b0[:, 0])
    pk = pk.at[:C_MID, 1].set(w1[:, 0])
    pk = pk.at[:, 2].set(w2[:, 0])
    pk = pk.at[:, 3].set(b2[:, 0])
    pk = pk.at[:, 4].set(w3[:, 0])
    pk = pk.at[0, 5].set(b1[0, 0])
    pk = pk.at[1, 5].set(b3[0, 0])
    w4b = jnp.concatenate([w4, b4], axis=1)       # (32, 10)
    return w0, pk, w4b


@jax.jit
def model_tanh_forward(x_nchw, params):
    n, c_in, h, w = x_nchw.shape
    assert c_in == C_IN and h >= 3 and w >= 3
    hw = h * w
    hw_out = (h - 2) * w                 # row-cropped flat output length
    hw_scr = hw + 2 * w + 2              # v7 plus zero tail for the 9 taps

    w0, pk, w4b = _pack_params(params)
    x3 = x_nchw.reshape(n, c_in, hw)     # free: H,W are contiguous in NCHW

    # Batch blocking: amortize per-grid-step pipeline overhead; capped at 2 so
    # the double-buffered footprint stays inside v5e's 16 MiB scoped default.
    # With n == 2 we keep b_blk = 1 so the grid has 2 parallel steps (v7x).
    b_blk = 2 if (n >= 4 and n % 2 == 0) else 1
    grid = (n // b_blk,)

    kern = functools.partial(_fused_kernel, width=w, hw_out=hw_out)

    out_flat = pl.pallas_call(
        kern,
        out_shape=jax.ShapeDtypeStruct((n, C_OUT, hw_out), jnp.float32),
        grid=grid,
        in_specs=[
            pl.BlockSpec((b_blk, c_in, hw), lambda i: (i, 0, 0)),
            pl.BlockSpec(w0.shape, lambda i: (0, 0)),
            pl.BlockSpec(pk.shape, lambda i: (0, 0)),
            pl.BlockSpec(w4b.shape, lambda i: (0, 0)),
        ],
        out_specs=pl.BlockSpec((b_blk, C_OUT, hw_out), lambda i: (i, 0, 0)),
        scratch_shapes=[pltpu.VMEM((1, hw_scr), jnp.float32)],
        compiler_params=pltpu.CompilerParams(
            dimension_semantics=("parallel",)),
    )(x3, w0, pk, w4b)

    # Only the W-2 column crop is left (the 2 bottom rows were never written).
    # In a larger pipeline keep this as a lazy view fused into the consumer.
    out = out_flat.reshape(n, C_OUT, h - 2, w)[:, :, :, :w - 2]
    return out  # NCHW: (N, 32, H-2, W-2)


# ---------------------------------------------------------------------------
# Deterministic parameter init (PyTorch Conv2d-style uniform bounds).
# Natural layouts (channels-on-sublanes convention):
#   w0: (9, 47)  = conv.weight[:, :, 0, 0]        b0: (9, 1)
#   w1: (9, 1)   = conv1.weight[0, :, 0, 0].T     b1: (1, 1)
#   w2: (47, 1)  = conv2.weight[:, 0, 0, 0]       b2: (47, 1)
#   w3: (47, 1)  = conv3.weight[0, :, 0, 0].T     b3: (1, 1)
#   w4: (32, 9)  = conv4.weight[:, 0].reshape     b4: (32, 1)
# ---------------------------------------------------------------------------
def init_params(key):
    ks = jax.random.split(key, 10)

    def u(k, shape, fan_in):
        bound = 1.0 / (fan_in ** 0.5)
        return jax.random.uniform(k, shape, jnp.float32, -bound, bound)

    w0 = u(ks[0], (C_MID, C_IN), C_IN);   b0 = u(ks[1], (C_MID, 1), C_IN)
    w1 = u(ks[2], (C_MID, 1), C_MID);     b1 = u(ks[3], (1, 1), C_MID)
    w2 = u(ks[4], (C_EXP, 1), 1);         b2 = u(ks[5], (C_EXP, 1), 1)
    w3 = u(ks[6], (C_EXP, 1), C_EXP);     b3 = u(ks[7], (1, 1), C_EXP)
    w4 = u(ks[8], (C_OUT, 9), 9);         b4 = u(ks[9], (C_OUT, 1), 9)
    return (w0, b0, w1, b1, w2, b2, w3, b3, w4, b4)


# Plain-JAX reference with identical math / weight layout, for verification.
def reference_forward(x_nchw, params):
    w0, b0, w1, b1, w2, b2, w3, b3, w4, b4 = params
    n, c, h, w = x_nchw.shape
    hi = jax.lax.Precision.HIGHEST
    x = x_nchw.reshape(n, c, h * w)
    v1 = jnp.tanh(jnp.einsum('kc,nct->nkt', w0, x, precision=hi) + b0[None])
    v3 = jnp.tanh(jnp.sum(v1 * w1[None], axis=1, keepdims=True) + b1[None])
    v5 = jnp.tanh(v3 * w2[None] + b2[None])
    v7 = jnp.tanh(jnp.sum(v5 * w3[None], axis=1, keepdims=True) + b3[None])
    v8 = v7.reshape(n, h, w)
    ho, wo = h - 2, w - 2
    out = jnp.zeros((n, C_OUT, ho, wo), jnp.float32) + b4.reshape(1, C_OUT, 1, 1)
    for di in range(3):
        for dj in range(3):
            patch = v8[:, None, di:di + ho, dj:dj + wo]
            out = out + patch * w4[:, di * 3 + dj].reshape(1, C_OUT, 1, 1)
    return out


if __name__ == "__main__":
    key = jax.random.PRNGKey(0)
    kx, kp, kx2 = jax.random.split(key, 3)
    params = init_params(kp)

    # Small shape: batch 2, non-square plane (exercises grid=(2,), tap wrap,
    # and the row-crop + column-crop path).
    x_small = jax.random.normal(kx, (2, C_IN, 16, 13), jnp.float32)
    out = jax.block_until_ready(model_tanh_forward(x_small, params))
    ref = reference_forward(x_small, params)
    assert out.shape == (2, C_OUT, 14, 11), out.shape
    err = float(jnp.max(jnp.abs(out - ref)))
    assert jnp.allclose(out, ref, atol=1e-4, rtol=1e-4), err

    # Spec shape from the module (1, 47, 56, 61): exercises lane padding and
    # the tap/row-crop interaction at the real plane size.
    x_spec = jax.random.normal(kx2, (1, C_IN, 56, 61), jnp.float32)
    out2 = jax.block_until_ready(model_tanh_forward(x_spec, params))
    ref2 = reference_forward(x_spec, params)
    assert out2.shape == (1, C_OUT, 54, 59), out2.shape
    err2 = float(jnp.max(jnp.abs(out2 - ref2)))
    assert jnp.allclose(out2, ref2, atol=1e-4, rtol=1e-4), err2

    print("KERNEL_OK")
</pallas_src>

<mosaic_0001>
module attributes {stable_mosaic.version = 11 : i64} {
  func.func @_fused_kernel(%arg0: i32, %arg1: memref<1x47x208xf32, #tpu.memory_space<vmem>>, %arg2: memref<9x47xf32, #tpu.memory_space<vmem>>, %arg3: memref<47x6xf32, #tpu.memory_space<vmem>>, %arg4: memref<32x10xf32, #tpu.memory_space<vmem>>, %arg5: memref<1x32x182xf32, #tpu.memory_space<vmem>>, %arg6: memref<1x236xf32, #tpu.memory_space<vmem>>) attributes {dimension_semantics = [#tpu.dimension_semantics<parallel>], iteration_bounds = array<i64: 2>, scalar_prefetch = 0 : i64, scratch_operands = 1 : i64, tpu.core_type = #tpu.core_type<tc>, window_params = [{transform_indices = @transform_0, window_bounds = array<i64: 1, 47, 208>}, {pipeline_mode = #tpu.pipeline_mode<synchronous>, transform_indices = @transform_1, window_bounds = array<i64: 9, 47>}, {pipeline_mode = #tpu.pipeline_mode<synchronous>, transform_indices = @transform_2, window_bounds = array<i64: 47, 6>}, {pipeline_mode = #tpu.pipeline_mode<synchronous>, transform_indices = @transform_3, window_bounds = array<i64: 32, 10>}, {transform_indices = @transform_4, window_bounds = array<i64: 1, 32, 182>}]} {
    %c0 = arith.constant 0 : index
    %c0_0 = arith.constant 0 : index
    %0 = vector.load %arg3[%c0, %c0_0] : memref<47x6xf32, #tpu.memory_space<vmem>>, vector<47x6xf32>
    %1 = vector.extract_strided_slice %0 {offsets = [0, 0], sizes = [9, 1], strides = [1, 1]} : vector<47x6xf32> to vector<9x1xf32>
    %2 = vector.extract_strided_slice %0 {offsets = [0, 1], sizes = [9, 1], strides = [1, 1]} : vector<47x6xf32> to vector<9x1xf32>
    %3 = vector.extract_strided_slice %0 {offsets = [0, 2], sizes = [47, 1], strides = [1, 1]} : vector<47x6xf32> to vector<47x1xf32>
    %4 = vector.extract_strided_slice %0 {offsets = [0, 3], sizes = [47, 1], strides = [1, 1]} : vector<47x6xf32> to vector<47x1xf32>
    %5 = vector.extract_strided_slice %0 {offsets = [0, 4], sizes = [47, 1], strides = [1, 1]} : vector<47x6xf32> to vector<47x1xf32>
    %6 = vector.extract_strided_slice %0 {offsets = [0, 5], sizes = [1, 1], strides = [1, 1]} : vector<47x6xf32> to vector<1x1xf32>
    %7 = vector.extract_strided_slice %0 {offsets = [1, 5], sizes = [1, 1], strides = [1, 1]} : vector<47x6xf32> to vector<1x1xf32>
    %c0_1 = arith.constant 0 : index
    %c0_2 = arith.constant 0 : index
    %8 = vector.load %arg2[%c0_1, %c0_2] : memref<9x47xf32, #tpu.memory_space<vmem>>, vector<9x47xf32>
    %c0_3 = arith.constant 0 : index
    %c0_4 = arith.constant 0 : index
    %9 = vector.load %arg4[%c0_3, %c0_4] : memref<32x10xf32, #tpu.memory_space<vmem>>, vector<32x10xf32>
    %cst = arith.constant 0.000000e+00 : f32
    %10 = vector.broadcast %cst : f32 to vector<1x236xf32>
    %c0_5 = arith.constant 0 : index
    %c0_6 = arith.constant 0 : index
    %11 = vector.load %arg6[%c0_5, %c0_6] : memref<1x236xf32, #tpu.memory_space<vmem>>, vector<1x236xf32>
    tpu.vector_store %arg6[%c0_5, %c0_6], %10 {strides = array<i32>} : memref<1x236xf32, #tpu.memory_space<vmem>>, vector<1x236xf32>,
    %c0_7 = arith.constant 0 : index
    %c0_8 = arith.constant 0 : index
    %c0_9 = arith.constant 0 : index
    %12 = vector.load %arg1[%c0_7, %c0_8, %c0_9] : memref<1x47x208xf32, #tpu.memory_space<vmem>>, vector<1x47x208xf32>
    %13 = vector.shape_cast %12 : vector<1x47x208xf32> to vector<47x208xf32>
    %cst_10 = arith.constant dense<0.000000e+00> : vector<9x208xf32>
    %14 = tpu.matmul %8, %13, %cst_10 {dimension_numbers = #tpu.dot_dimension_numbers<[1], [0], [0], [1], [0, 0, 1, 1], [], []>, precision = #tpu.contract_precision<fp32>} : vector<9x47xf32>, vector<47x208xf32>, vector<9x208xf32> -> vector<9x208xf32>
    %15 = vector.broadcast %1 : vector<9x1xf32> to vector<9x208xf32>
    %16 = arith.addf %14, %15 : vector<9x208xf32>
    %17 = math.tanh %16 : vector<9x208xf32>
    %18 = vector.broadcast %2 : vector<9x1xf32> to vector<9x208xf32>
    %19 = arith.mulf %17, %18 : vector<9x208xf32>
    %cst_11 = arith.constant dense<0.000000e+00> : vector<208xf32>
    %20 = vector.multi_reduction <add>, %19, %cst_11 [0] : vector<9x208xf32> to vector<208xf32>
    %21 = vector.shape_cast %20 : vector<208xf32> to vector<1x208xf32>
    %22 = vector.broadcast %6 : vector<1x1xf32> to vector<1x208xf32>
    %23 = arith.addf %21, %22 : vector<1x208xf32>
    %24 = math.tanh %23 : vector<1x208xf32>
    %25 = vector.broadcast %24 : vector<1x208xf32> to vector<47x208xf32>
    %26 = vector.broadcast %3 : vector<47x1xf32> to vector<47x208xf32>
    %27 = arith.mulf %25, %26 : vector<47x208xf32>
    %28 = vector.broadcast %4 : vector<47x1xf32> to vector<47x208xf32>
    %29 = arith.addf %27, %28 : vector<47x208xf32>
    %30 = math.tanh %29 : vector<47x208xf32>
    %31 = vector.broadcast %5 : vector<47x1xf32> to vector<47x208xf32>
    %32 = arith.mulf %30, %31 : vector<47x208xf32>
    %cst_12 = arith.constant dense<0.000000e+00> : vector<208xf32>
    %33 = vector.multi_reduction <add>, %32, %cst_12 [0] : vector<47x208xf32> to vector<208xf32>
    %34 = vector.shape_cast %33 : vector<208xf32> to vector<1x208xf32>
    %35 = vector.broadcast %7 : vector<1x1xf32> to vector<1x208xf32>
    %36 = arith.addf %34, %35 : vector<1x208xf32>
    %37 = math.tanh %36 : vector<1x208xf32>
    %c0_13 = arith.constant 0 : index
    %c0_14 = arith.constant 0 : index
    %38 = vector.load %arg6[%c0_13, %c0_14] : memref<1x236xf32, #tpu.memory_space<vmem>>, vector<1x208xf32>
    tpu.vector_store %arg6[%c0_13, %c0_14], %37 {strides = array<i32>} : memref<1x236xf32, #tpu.memory_space<vmem>>, vector<1x208xf32>,
    %c0_15 = arith.constant 0 : index
    %c0_16 = arith.constant 0 : index
    %39 = vector.load %arg6[%c0_15, %c0_16] : memref<1x236xf32, #tpu.memory_space<vmem>>, vector<1x236xf32>
    %40 = vector.extract_strided_slice %9 {offsets = [0, 9], sizes = [32, 1], strides = [1, 1]} : vector<32x10xf32> to vector<32x1xf32>
    %41 = vector.shape_cast %40 : vector<32x1xf32> to vector<32x1xf32>
    %42 = vector.broadcast %41 : vector<32x1xf32> to vector<32x182xf32>
    %43 = vector.extract_strided_slice %9 {offsets = [0, 0], sizes = [32, 1], strides = [1, 1]} : vector<32x10xf32> to vector<32x1xf32>
    %44 = vector.extract_strided_slice %39 {offsets = [0, 0], sizes = [1, 182], strides = [1, 1]} : vector<1x236xf32> to vector<1x182xf32>
    %45 = vector.broadcast %43 : vector<32x1xf32> to vector<32x182xf32>
    %46 = vector.broadcast %44 : vector<1x182xf32> to vector<32x182xf32>
    %47 = arith.mulf %45, %46 : vector<32x182xf32>
    %48 = arith.addf %42, %47 : vector<32x182xf32>
    %49 = vector.extract_strided_slice %9 {offsets = [0, 1], sizes = [32, 1], strides = [1, 1]} : vector<32x10xf32> to vector<32x1xf32>
    %50 = vector.extract_strided_slice %39 {offsets = [0, 1], sizes = [1, 182], strides = [1, 1]} : vector<1x236xf32> to vector<1x182xf32>
    %51 = vector.broadcast %49 : vector<32x1xf32> to vector<32x182xf32>
    %52 = vector.broadcast %50 : vector<1x182xf32> to vector<32x182xf32>
    %53 = arith.mulf %51, %52 : vector<32x182xf32>
    %54 = arith.addf %48, %53 : vector<32x182xf32>
    %55 = vector.extract_strided_slice %9 {offsets = [0, 2], sizes = [32, 1], strides = [1, 1]} : vector<32x10xf32> to vector<32x1xf32>
    %56 = vector.extract_strided_slice %39 {offsets = [0, 2], sizes = [1, 182], strides = [1, 1]} : vector<1x236xf32> to vector<1x182xf32>
    %57 = vector.broadcast %55 : vector<32x1xf32> to vector<32x182xf32>
    %58 = vector.broadcast %56 : vector<1x182xf32> to vector<32x182xf32>
    %59 = arith.mulf %57, %58 : vector<32x182xf32>
    %60 = arith.addf %54, %59 : vector<32x182xf32>
    %61 = vector.extract_strided_slice %9 {offsets = [0, 3], sizes = [32, 1], strides = [1, 1]} : vector<32x10xf32> to vector<32x1xf32>
    %62 = vector.extract_strided_slice %39 {offsets = [0, 13], sizes = [1, 182], strides = [1, 1]} : vector<1x236xf32> to vector<1x182xf32>
    %63 = vector.broadcast %61 : vector<32x1xf32> to vector<32x182xf32>
    %64 = vector.broadcast %62 : vector<1x182xf32> to vector<32x182xf32>
    %65 = arith.mulf %63, %64 : vector<32x182xf32>
    %66 = arith.addf %60, %65 : vector<32x182xf32>
    %67 = vector.extract_strided_slice %9 {offsets = [0, 4], sizes = [32, 1], strides = [1, 1]} : vector<32x10xf32> to vector<32x1xf32>
    %68 = vector.extract_strided_slice %39 {offsets = [0, 14], sizes = [1, 182], strides = [1, 1]} : vector<1x236xf32> to vector<1x182xf32>
    %69 = vector.broadcast %67 : vector<32x1xf32> to vector<32x182xf32>
    %70 = vector.broadcast %68 : vector<1x182xf32> to vector<32x182xf32>
    %71 = arith.mulf %69, %70 : vector<32x182xf32>
    %72 = arith.addf %66, %71 : vector<32x182xf32>
    %73 = vector.extract_strided_slice %9 {offsets = [0, 5], sizes = [32, 1], strides = [1, 1]} : vector<32x10xf32> to vector<32x1xf32>
    %74 = vector.extract_strided_slice %39 {offsets = [0, 15], sizes = [1, 182], strides = [1, 1]} : vector<1x236xf32> to vector<1x182xf32>
    %75 = vector.broadcast %73 : vector<32x1xf32> to vector<32x182xf32>
    %76 = vector.broadcast %74 : vector<1x182xf32> to vector<32x182xf32>
    %77 = arith.mulf %75, %76 : vector<32x182xf32>
    %78 = arith.addf %72, %77 : vector<32x182xf32>
    %79 = vector.extract_strided_slice %9 {offsets = [0, 6], sizes = [32, 1], strides = [1, 1]} : vector<32x10xf32> to vector<32x1xf32>
    %80 = vector.extract_strided_slice %39 {offsets = [0, 26], sizes = [1, 182], strides = [1, 1]} : vector<1x236xf32> to vector<1x182xf32>
    %81 = vector.broadcast %79 : vector<32x1xf32> to vector<32x182xf32>
    %82 = vector.broadcast %80 : vector<1x182xf32> to vector<32x182xf32>
    %83 = arith.mulf %81, %82 : vector<32x182xf32>
    %84 = arith.addf %78, %83 : vector<32x182xf32>
    %85 = vector.extract_strided_slice %9 {offsets = [0, 7], sizes = [32, 1], strides = [1, 1]} : vector<32x10xf32> to vector<32x1xf32>
    %86 = vector.extract_strided_slice %39 {offsets = [0, 27], sizes = [1, 182], strides = [1, 1]} : vector<1x236xf32> to vector<1x182xf32>
    %87 = vector.broadcast %85 : vector<32x1xf32> to vector<32x182xf32>
    %88 = vector.broadcast %86 : vector<1x182xf32> to vector<32x182xf32>
    %89 = arith.mulf %87, %88 : vector<32x182xf32>
    %90 = arith.addf %84, %89 : vector<32x182xf32>
    %91 = vector.extract_strided_slice %9 {offsets = [0, 8], sizes = [32, 1], strides = [1, 1]} : vector<32x10xf32> to vector<32x1xf32>
    %92 = vector.extract_strided_slice %39 {offsets = [0, 28], sizes = [1, 182], strides = [1, 1]} : vector<1x236xf32> to vector<1x182xf32>
    %93 = vector.broadcast %91 : vector<32x1xf32> to vector<32x182xf32>
    %94 = vector.broadcast %92 : vector<1x182xf32> to vector<32x182xf32>
    %95 = arith.mulf %93, %94 : vector<32x182xf32>
    %96 = arith.addf %90, %95 : vector<32x182xf32>
    %c0_17 = arith.constant 0 : index
    %c0_18 = arith.constant 0 : index
    %c0_19 = arith.constant 0 : index
    %97 = vector.load %arg5[%c0_17, %c0_18, %c0_19] : memref<1x32x182xf32, #tpu.memory_space<vmem>>, vector<1x32x182xf32>
    %98 = vector.shape_cast %97 : vector<1x32x182xf32> to vector<32x182xf32>
    %99 = vector.shape_cast %96 : vector<32x182xf32> to vector<1x32x182xf32>
    tpu.vector_store %arg5[%c0_17, %c0_18, %c0_19], %99 {strides = array<i32>} : memref<1x32x182xf32, #tpu.memory_space<vmem>>, vector<1x32x182xf32>,
    return
  }
  func.func @transform_0(%arg0: i32) -> (i32, i32, i32) {
    %c0_i32 = arith.constant 0 : i32
    %c0_i32_0 = arith.constant 0 : i32
    %c0_i32_1 = arith.constant 0 : i32
    return %arg0, %c0_i32, %c0_i32_0 : i32, i32, i32
  }
  func.func @transform_1(%arg0: i32) -> (i32, i32) {
    %c0_i32 = arith.constant 0 : i32
    %c0_i32_0 = arith.constant 0 : i32
    %c0_i32_1 = arith.constant 0 : i32
    return %c0_i32, %c0_i32_0 : i32, i32
  }
  func.func @transform_2(%arg0: i32) -> (i32, i32) {
    %c0_i32 = arith.constant 0 : i32
    %c0_i32_0 = arith.constant 0 : i32
    %c0_i32_1 = arith.constant 0 : i32
    return %c0_i32, %c0_i32_0 : i32, i32
  }
  func.func @transform_3(%arg0: i32) -> (i32, i32) {
    %c0_i32 = arith.constant 0 : i32
    %c0_i32_0 = arith.constant 0 : i32
    %c0_i32_1 = arith.constant 0 : i32
    return %c0_i32, %c0_i32_0 : i32, i32
  }
  func.func @transform_4(%arg0: i32) -> (i32, i32, i32) {
    %c0_i32 = arith.constant 0 : i32
    %c0_i32_0 = arith.constant 0 : i32
    %c0_i32_1 = arith.constant 0 : i32
    return %arg0, %c0_i32, %c0_i32_0 : i32, i32, i32
  }
}

</mosaic_0001>

<llo_original>
// kernel: model_tanh_forward.1
$region0: #{model_tanh_forward.1}
  #allocation0 [shape = 'u32[]', space=smem, size = 0x4, offset = 0x4, fixed_abs, tag = 'smem constant byte address 0x4 - core index']
  #allocation1 [shape = 'u32[144,128]{1,0:T(1,128)}', space=vmem, size = 0x12000, scoped, tag = 'internal scratch']
  #allocation2 [shape = 'f32[1,236]{1,0:T(1,128)}', space=vmem, size = 0x400, scoped, tag = 'scratch operand']
  %s0 = inlined_call_operand.vmem [shape: f32[2,47,208], index: 0, kind: input, shape index: {}]
  %s1 = inlined_call_operand.vmem [shape: f32[9,47], index: 1, kind: input, shape index: {}]
  %s2 = inlined_call_operand.vmem [shape: f32[47,6], index: 2, kind: input, shape index: {}]
  %s3 = inlined_call_operand.vmem [shape: f32[32,10], index: 3, kind: input, shape index: {}]
  %s4 = inlined_call_operand.vmem [shape: f32[2,32,182], index: 4, kind: output, shape index: {}]
  %s5 = sld [smem:[#allocation0]]
  $region49: #{model_tanh_forward.1} parent=0
    _
  %s7 = ssub.s32 1, %s5
  %s8 = scalar_select 0, %s7, %s5
  loop: start=0, step=1, limit=4
  $region2: #{model_tanh_forward.1} parent=0 // loop_pre_header
    _
  $region3: #{model_tanh_forward.1} parent=0 // loop_header
    %s10 = sphi 0, %s14
    %p11 = scmp.ge.s32.totalorder %s10, 4
    %s20 = sphi 0, %s22
    %s23 = sphi 0, %s20
    %s24 = sphi 0, %s23
    %s40 = sphi 0, %s24
    %s44 = sphi 0, %s44
    %s46 = sphi 0, %s44
    %s47 = sphi 0, %s46
    %s61 = sphi 0, %s47
    %s65 = sphi 0, %s65
    %s67 = sphi 0, %s65
    %s68 = sphi 0, %s67
    %s82 = sphi 0, %s68
    %s86 = sphi 0, %s86
    %s88 = sphi 0, %s86
    %s89 = sphi 0, %s88
    %s103 = sphi 0, %s89
    %s109 = sphi 0, %s111
    %s112 = sphi 0, %s109
    %s113 = sphi 0, %s112
    %s129 = sphi 0, %s113
  $region4: #{model_tanh_forward.1} parent=0 // loop_header_branch
    %13 = sbr.rel (%p11) target = $region8
  $region5: #{model_tanh_forward.1} parent=0 // loop_body
    %s15 = ssub.s32 %s10, 1
    %s16 = ssub.s32 %s10, 2
    %s17 = sadd.s32 %s10, 1
    %s18 = ssub.s32 %s10, %s17
    %p19 = scmp.eq.s32.totalorder %s18, 0
    %s21 = sadd.s32 %s20, 1
    %s22 = scalar_select %p19, %s20, %s21
    %p25 = pneg %p19
    %p26 = scmp.eq.s32.totalorder %s10, 1
    %p27 = por %p25, %p26
    %p28 = scmp.ne.s32.totalorder %s20, %s23
    %p29 = scmp.eq.s32.totalorder %s10, 0
    %p30 = por %p28, %p29
    %p31 = scmp.ne.s32.totalorder %s20, %s23
    %p32 = scmp.eq.s32.totalorder %s15, 1
    %p33 = por %p31, %p32
    %p34 = scmp.ne.s32.totalorder %s23, %s24
    %p35 = scmp.eq.s32.totalorder %s15, 0
    %p36 = por %p34, %p35
    %p37 = scmp.ne.s32.totalorder %s23, %s24
    %p38 = scmp.eq.s32.totalorder %s16, 1
    %p39 = por %p37, %p38
    %p41 = scmp.ne.s32.totalorder %s24, %s40
    %p42 = scmp.eq.s32.totalorder %s16, 0
    %p43 = por %p41, %p42
    %s45 = sadd.s32 %s44, 1
    %p48 = scmp.eq.s32.totalorder %s10, 1
    %p49 = scmp.ne.s32.totalorder %s44, %s46
    %p50 = scmp.eq.s32.totalorder %s10, 0
    %p51 = por %p49, %p50
    %p52 = scmp.ne.s32.totalorder %s44, %s46
    %p53 = scmp.eq.s32.totalorder %s15, 1
    %p54 = por %p52, %p53
    %p55 = scmp.ne.s32.totalorder %s46, %s47
    %p56 = scmp.eq.s32.totalorder %s15, 0
    %p57 = por %p55, %p56
    %p58 = scmp.ne.s32.totalorder %s46, %s47
    %p59 = scmp.eq.s32.totalorder %s16, 1
    %p60 = por %p58, %p59
    %p62 = scmp.ne.s32.totalorder %s47, %s61
    %p63 = scmp.eq.s32.totalorder %s16, 0
    %p64 = por %p62, %p63
    %s66 = sadd.s32 %s65, 1
    %p69 = scmp.eq.s32.totalorder %s10, 1
    %p70 = scmp.ne.s32.totalorder %s65, %s67
    %p71 = scmp.eq.s32.totalorder %s10, 0
    %p72 = por %p70, %p71
    %p73 = scmp.ne.s32.totalorder %s65, %s67
    %p74 = scmp.eq.s32.totalorder %s15, 1
    %p75 = por %p73, %p74
    %p76 = scmp.ne.s32.totalorder %s67, %s68
    %p77 = scmp.eq.s32.totalorder %s15, 0
    %p78 = por %p76, %p77
    %p79 = scmp.ne.s32.totalorder %s67, %s68
    %p80 = scmp.eq.s32.totalorder %s16, 1
    %p81 = por %p79, %p80
    %p83 = scmp.ne.s32.totalorder %s68, %s82
    %p84 = scmp.eq.s32.totalorder %s16, 0
    %p85 = por %p83, %p84
    %s87 = sadd.s32 %s86, 1
    %p90 = scmp.eq.s32.totalorder %s10, 1
    %p91 = scmp.ne.s32.totalorder %s86, %s88
    %p92 = scmp.eq.s32.totalorder %s10, 0
    %p93 = por %p91, %p92
    %p94 = scmp.ne.s32.totalorder %s86, %s88
    %p95 = scmp.eq.s32.totalorder %s15, 1
    %p96 = por %p94, %p95
    %p97 = scmp.ne.s32.totalorder %s88, %s89
    %p98 = scmp.eq.s32.totalorder %s15, 0
    %p99 = por %p97, %p98
    %p100 = scmp.ne.s32.totalorder %s88, %s89
    %p101 = scmp.eq.s32.totalorder %s16, 1
    %p102 = por %p100, %p101
    %p104 = scmp.ne.s32.totalorder %s89, %s103
    %p105 = scmp.eq.s32.totalorder %s16, 0
    %p106 = por %p104, %p105
    %s107 = ssub.s32 %s10, %s17
    %p108 = scmp.eq.s32.totalorder %s107, 0
    %s110 = sadd.s32 %s109, 1
    %s111 = scalar_select %p108, %s109, %s110
    %p114 = pneg %p108
    %p115 = scmp.eq.s32.totalorder %s10, 1
    %p116 = por %p114, %p115
    %p117 = scmp.ne.s32.totalorder %s109, %s112
    %p118 = scmp.eq.s32.totalorder %s10, 0
    %p119 = por %p117, %p118
    %p120 = scmp.ne.s32.totalorder %s109, %s112
    %p121 = scmp.eq.s32.totalorder %s15, 1
    %p122 = por %p120, %p121
    %p123 = scmp.ne.s32.totalorder %s112, %s113
    %p124 = scmp.eq.s32.totalorder %s15, 0
    %p125 = por %p123, %p124
    %p126 = scmp.ne.s32.totalorder %s112, %s113
    %p127 = scmp.eq.s32.totalorder %s16, 1
    %p128 = por %p126, %p127
    %p130 = scmp.ne.s32.totalorder %s113, %s129
    %p131 = scmp.eq.s32.totalorder %s16, 0
    %p132 = por %p130, %p131
    %p133 = scmp.le.s32.totalorder 1, %s10
    %p134 = scmp.lt.s32.totalorder %s10, 3
    %p135 = pnand %p133, %p134
    %p136 = pneg %p135
    // Predicated region
    $region9: #{model_tanh_forward.1} parent=5 // pred_check
      _
    $region10: #{model_tanh_forward.1} parent=5 // pred_check_branch
      %138 = sbr.rel (%p135) target = $region12
    $region11: #{model_tanh_forward.1} parent=5 // pred_region
      %s139 = ssub.s32 %s10, 1
      // Predicated region
      $region13: #{model_tanh_forward.1} parent=11 // pred_check
        %p140 = pneg %p57
      $region14: #{model_tanh_forward.1} parent=11 // pred_check_branch
        %142 = sbr.rel (%p140) target = $region16
      $region15: #{model_tanh_forward.1} parent=11 // pred_region
        _
      $region16: #{model_tanh_forward.1} parent=11 // pred_fallthru
        _
      // Predicated region
      $region17: #{model_tanh_forward.1} parent=11 // pred_check
        %p143 = pneg %p78
      $region18: #{model_tanh_forward.1} parent=11 // pred_check_branch
        %145 = sbr.rel (%p143) target = $region20
      $region19: #{model_tanh_forward.1} parent=11 // pred_region
        _
      $region20: #{model_tanh_forward.1} parent=11 // pred_fallthru
        _
      // Predicated region
      $region21: #{model_tanh_forward.1} parent=11 // pred_check
        %p146 = pneg %p99
      $region22: #{model_tanh_forward.1} parent=11 // pred_check_branch
        %148 = sbr.rel (%p146) target = $region24
      $region23: #{model_tanh_forward.1} parent=11 // pred_region
        _
      $region24: #{model_tanh_forward.1} parent=11 // pred_fallthru
        _
    $region12: #{model_tanh_forward.1} parent=5 // pred_fallthru
      _
    %p149 = scmp.lt.s32.totalorder %s10, 2
    // Predicated region
    $region25: #{model_tanh_forward.1} parent=5 // pred_check
      %p150 = pneg %p149
    $region26: #{model_tanh_forward.1} parent=5 // pred_check_branch
      %152 = sbr.rel (%p150) target = $region28
    $region27: #{model_tanh_forward.1} parent=5 // pred_region
      // Predicated region
      $region29: #{model_tanh_forward.1} parent=27 // pred_check
        %p153 = pneg %p30
      $region30: #{model_tanh_forward.1} parent=27 // pred_check_branch
        %155 = sbr.rel (%p153) target = $region32
      $region31: #{model_tanh_forward.1} parent=27 // pred_region
        %p156 = scmp.lt.s32.totalorder %s10, 1
        %s157 = scalar_select %p156, %s10, 1
        %s158 = smul.addr %s157, 12
        %s159 = smul.addr %s158, 8
        %s160 = scalar_lea.vmem %s0, %s159
      $region32: #{model_tanh_forward.1} parent=27 // pred_fallthru
        _
    $region28: #{model_tanh_forward.1} parent=5 // pred_fallthru
      _
    %p161 = scmp.le.s32.totalorder 1, %s10
    %p162 = scmp.lt.s32.totalorder %s10, 3
    %p163 = pnand %p161, %p162
    %p164 = pneg %p163
    // Predicated region
    $region33: #{model_tanh_forward.1} parent=5 // pred_check
      _
    $region34: #{model_tanh_forward.1} parent=5 // pred_check_branch
      %166 = sbr.rel (%p163) target = $region36
    $region35: #{model_tanh_forward.1} parent=5 // pred_region
      %s167 = ssub.s32 %s10, 1
      %p168 = scmp.lt.s32.totalorder %s15, 1
      %s169 = scalar_select %p168, %s15, 1
      %s170 = smul.addr %s169, 12
      %s171 = smul.addr %s170, 8
      %s172 = scalar_lea.vmem %s0, %s171
      %p173 = pneg %p36
      %p174 = pneg %p33
      %p175 = pneg %p57
      %p176 = pneg %p54
      %p177 = pneg %p78
      %p178 = pneg %p75
      %p179 = pneg %p99
      %p180 = pneg %p96
      %p181 = pneg %p125
      %p182 = pneg %p122
      %p183 = scmp.lt.s32.totalorder %s15, 1
      %s184 = scalar_select %p183, %s15, 1
      %s185 = smul.addr %s184, 8
      %s186 = smul.addr %s185, 8
      %s187 = scalar_lea.vmem %s4, %s186
      %p188 = scmp.lt.s32.totalorder %s15, 1
      %s189 = scalar_select %p188, %s15, 1
      %s190 = smul.addr %s189, 12
      %s191 = smul.addr %s190, 8
      %s192 = scalar_lea.vmem %s0, %s191
      %p193 = scmp.lt.s32.totalorder %s15, 1
      %s194 = scalar_select %p193, %s15, 1
      %s195 = smul.addr %s194, 8
      %s196 = smul.addr %s195, 8
      %s197 = scalar_lea.vmem %s4, %s196
      %v198 = vld [vmem:[%s2] sm:$0xff]
      %v199 = vld [vmem:[%s2 + $0x8] sm:$0xff]
      %v200 = vld [vmem:[%s2 + $0x10] sm:$0xff]
      %v201 = vld [vmem:[%s2 + $0x18] sm:$0xff]
      %v202 = vld [vmem:[%s2 + $0x20] sm:$0xff]
      %v203 = vld [vmem:[%s2 + $0x28] sm:$0x7f]
      %v204 = vld [vmem:[%s1] sm:$0xff]
      %v205 = vld [vmem:[%s1 + $0x8] sm:$0x1]
      %v206 = vld [vmem:[%s3] sm:$0xff]
      %v207 = vld [vmem:[%s3 + $0x8] sm:$0xff]
      %v208 = vld [vmem:[%s3 + $0x10] sm:$0xff]
      %v209 = vld [vmem:[%s3 + $0x18] sm:$0xff]
      %v210 = vlaneseq
      %vm211 = vcmp.ge.s32.totalorder %v210, 0
      %vm212 = vcmp.lt.s32.totalorder %v210, 236
      %vm213 = vmand %vm211, %vm212
      %214 = vst.msk [vmem:[#allocation2] sm:$0x3] %vm213, 0.0
      %v215 = vld [vmem:[%s192] sm:$0xff]
      %v216 = vld [vmem:[%s192 + $0x8] sm:$0xff]
      %v217 = vld [vmem:[%s192 + $0x10] sm:$0xff]
      %v218 = vld [vmem:[%s192 + $0x18] sm:$0xff]
      %v219 = vld [vmem:[%s192 + $0x20] sm:$0xff]
      %v220 = vld [vmem:[%s192 + $0x28] sm:$0xff]
      %v221 = vld [vmem:[%s192 + $0x30] sm:$0xff]
      %v222 = vld [vmem:[%s192 + $0x38] sm:$0xff]
      %v223 = vld [vmem:[%s192 + $0x40] sm:$0xff]
      %v224 = vld [vmem:[%s192 + $0x48] sm:$0xff]
      %v225 = vld [vmem:[%s192 + $0x50] sm:$0x7f]
      %v226 = vld [vmem:[%s192 + $0x58] sm:$0x7f]
      %228 = vset.pattern.permute.xlu0 0
      %229 = vperm.xlu0 %228, %v198
      %v230 = vpop.permute.xlu0 %229
      %233 = vset.pattern.permute.xlu0 0
      %234 = vperm.xlu0 %233, %v199
      %v235 = vpop.permute.xlu0 %234
      %vm237 = vcmask 384000
      %v239 = vsel %vm237, %v204, 0
      %v242 = vsel %vm237, %v205, 0
      %vm244 = vcmask 1046528
      %v246 = vsel %vm244, %v225, 0
      %v249 = vsel %vm244, %v226, 0
      %v251 = vand.u32 %v216, 4294901760
      %252 = vmatprep.subr.mxu0 %v251
      %v253 = vand.u32 %v215, 4294901760
      %254 = vmatpush1.msra.mxu0 %v253
      %v255 = vand.u32 %v218, 4294901760
      %256 = vmatprep.subr.mxu0 %v255
      %v257 = vand.u32 %v217, 4294901760
      %258 = vmatpush1.msra.mxu0 %v257
      %v259 = vand.u32 %v220, 4294901760
      %260 = vmatprep.subr.mxu0 %v259
      %v261 = vand.u32 %v219, 4294901760
      %262 = vmatpush1.msra.mxu0 %v261
      %v263 = vand.u32 %v222, 4294901760
      %264 = vmatprep.subr.mxu0 %v263
      %v265 = vand.u32 %v221, 4294901760
      %266 = vmatpush1.msra.mxu0 %v265
      %v267 = vand.u32 %v224, 4294901760
      %268 = vmatprep.subr.mxu0 %v267
      %v269 = vand.u32 %v223, 4294901760
      %270 = vmatpush1.msra.mxu0 %v269
      %v271 = vand.u32 %v249, 4294901760
      %272 = vmatprep.subr.mxu0 %v271
      %v273 = vand.u32 %v246, 4294901760
      %274 = vmatpush1.msra.mxu0 %v273
      %275 = vmatprep.subr.mxu0 0.0
      %276 = vmatpush1.msra.mxu0 0.0
      %277 = vmatprep.subr.mxu0 0.0
      %278 = vmatpush1.msra.mxu0 0.0
      %279 = vmatprep.subr.mxu0 0.0
      %280 = vmatpush1.msra.mxu0 0.0
      %281 = vmatprep.subr.mxu0 0.0
      %282 = vmatpush1.msra.mxu0 0.0
      %283 = vmatprep.subr.mxu0 0.0
      %284 = vmatpush1.msra.mxu0 0.0
      %285 = vmatprep.subr.mxu0 0.0
      %286 = vmatpush1.msra.mxu0 0.0
      %287 = vmatprep.subr.mxu0 0.0
      %288 = vmatpush1.msra.mxu0 0.0
      %289 = vmatprep.subr.mxu0 0.0
      %290 = vmatpush1.msra.mxu0 0.0
      %291 = vmatprep.subr.mxu0 0.0
      %292 = vmatpush1.msra.mxu0 0.0
      %293 = vmatprep.subr.mxu0 0.0
      %294 = vmatpush1.msra.mxu0 0.0
      %295 = vmatprep.subr.mxu0 0.0
      %296 = vmatpush1.msra.mxu0 0.0
      %297 = vmatprep.subr.mxu0 0.0
      %298 = vmatpush1.msra.mxu0 0.0
      %299 = vmatprep.subr.mxu0 0.0
      %300 = vmatpush1.msra.mxu0 0.0
      %301 = vmatprep.subr.mxu0 0.0
      %302 = vmatpush1.msra.mxu0 0.0
      %303 = vmatprep.subr.mxu0 0.0
      %304 = vmatpush1.msra.mxu0 0.0
      %305 = vmatprep.subr.mxu0 0.0
      %306 = vmatpush1.msra.mxu0 0.0
      %307 = vmatprep.subr.mxu0 0.0
      %308 = vmatpush1.msra.mxu0 0.0
      %309 = vmatprep.subr.mxu0 0.0
      %310 = vmatpush1.msra.mxu0 0.0
      %311 = vmatprep.subr.mxu0 0.0
      %312 = vmatpush1.msra.mxu0 0.0
      %313 = vmatprep.subr.mxu0 0.0
      %314 = vmatpush1.msra.mxu0 0.0
      %315 = vmatprep.subr.mxu0 0.0
      %316 = vmatpush1.msra.mxu0 0.0
      %317 = vmatprep.subr.mxu0 0.0
      %318 = vmatpush1.msra.mxu0 0.0
      %319 = vmatprep.subr.mxu0 0.0
      %320 = vmatpush1.msra.mxu0 0.0
      %321 = vmatprep.subr.mxu0 0.0
      %322 = vmatpush1.msra.mxu0 0.0
      %323 = vmatprep.subr.mxu0 0.0
      %324 = vmatpush1.msra.mxu0 0.0
      %325 = vmatprep.subr.mxu0 0.0
      %326 = vmatpush1.msra.mxu0 0.0
      %327 = vmatprep.mubr.f32.mxu0 0.0
      %v328 = vand.u32 %v239, 4294901760
      %v329 = vsub.f32 %v239, %v328
      %v330 = vand.u32 %v329, 4294901760
      %v331 = vsub.f32 %v329, %v330
      %v332 = vand.u32 %v331, 4294901760
      %333 = vmatmul.mubr.f32.gmra.mrb[0].mxu0 %v332
      %v334 = vpop.f32.mrb[0].mxu0
      %v335 = vadd.f32 %v230, %v334
      %v336 = vpop.f32.mrb[0].mxu0
      %v337 = vadd.f32 %v230, %v336
      %338 = vmatprep.mubr.f32.mxu0 0.0
      %v339 = vand.u32 %v242, 4294901760
      %v340 = vsub.f32 %v242, %v339
      %v341 = vand.u32 %v340, 4294901760
      %v342 = vsub.f32 %v340, %v341
      %v343 = vand.u32 %v342, 4294901760
      %344 = vmatmul.mubr.f32.gmra.mrb[0].mxu0 %v343
      %v345 = vpop.f32.mrb[0].mxu0
      %v346 = vadd.f32 %v235, %v345
      %v347 = vpop.f32.mrb[0].mxu0
      %v348 = vadd.f32 %v235, %v347
      %349 = vdwg.mxu0
      %v350 = vand.u32 %v216, 4294901760
      %v351 = vsub.f32 %v216, %v350
      %v352 = vand.u32 %v351, 4294901760
      %v353 = vsub.f32 %v351, %v352
      %v354 = vand.u32 %v353, 4294901760
      %355 = vmatprep.subr.mxu0 %v354
      %v356 = vand.u32 %v215, 4294901760
      %v357 = vsub.f32 %v215, %v356
      %v358 = vand.u32 %v357, 4294901760
      %v359 = vsub.f32 %v357, %v358
      %v360 = vand.u32 %v359, 4294901760
      %361 = vmatpush1.msra.mxu0 %v360
      %v362 = vand.u32 %v218, 4294901760
      %v363 = vsub.f32 %v218, %v362
      %v364 = vand.u32 %v363, 4294901760
      %v365 = vsub.f32 %v363, %v364
      %v366 = vand.u32 %v365, 4294901760
      %367 = vmatprep.subr.mxu0 %v366
      %v368 = vand.u32 %v217, 4294901760
      %v369 = vsub.f32 %v217, %v368
      %v370 = vand.u32 %v369, 4294901760
      %v371 = vsub.f32 %v369, %v370
      %v372 = vand.u32 %v371, 4294901760
      %373 = vmatpush1.msra.mxu0 %v372
      %v374 = vand.u32 %v220, 4294901760
      %v375 = vsub.f32 %v220, %v374
      %v376 = vand.u32 %v375, 4294901760
      %v377 = vsub.f32 %v375, %v376
      %v378 = vand.u32 %v377, 4294901760
      %379 = vmatprep.subr.mxu0 %v378
      %v380 = vand.u32 %v219, 4294901760
      %v381 = vsub.f32 %v219, %v380
      %v382 = vand.u32 %v381, 4294901760
      %v383 = vsub.f32 %v381, %v382
      %v384 = vand.u32 %v383, 4294901760
      %385 = vmatpush1.msra.mxu0 %v384
      %v386 = vand.u32 %v222, 4294901760
      %v387 = vsub.f32 %v222, %v386
      %v388 = vand.u32 %v387, 4294901760
      %v389 = vsub.f32 %v387, %v388
      %v390 = vand.u32 %v389, 4294901760
      %391 = vmatprep.subr.mxu0 %v390
      %v392 = vand.u32 %v221, 4294901760
      %v393 = vsub.f32 %v221, %v392
      %v394 = vand.u32 %v393, 4294901760
      %v395 = vsub.f32 %v393, %v394
      %v396 = vand.u32 %v395, 4294901760
      %397 = vmatpush1.msra.mxu0 %v396
      %v398 = vand.u32 %v224, 4294901760
      %v399 = vsub.f32 %v224, %v398
      %v400 = vand.u32 %v399, 4294901760
      %v401 = vsub.f32 %v399, %v400
      %v402 = vand.u32 %v401, 4294901760
      %403 = vmatprep.subr.mxu0 %v402
      %v404 = vand.u32 %v223, 4294901760
      %v405 = vsub.f32 %v223, %v404
      %v406 = vand.u32 %v405, 4294901760
      %v407 = vsub.f32 %v405, %v406
      %v408 = vand.u32 %v407, 4294901760
      %409 = vmatpush1.msra.mxu0 %v408
      %v410 = vand.u32 %v249, 4294901760
      %v411 = vsub.f32 %v249, %v410
      %v412 = vand.u32 %v411, 4294901760
      %v413 = vsub.f32 %v411, %v412
      %v414 = vand.u32 %v413, 4294901760
      %415 = vmatprep.subr.mxu0 %v414
      %v416 = vand.u32 %v246, 4294901760
      %v417 = vsub.f32 %v246, %v416
      %v418 = vand.u32 %v417, 4294901760
      %v419 = vsub.f32 %v417, %v418
      %v420 = vand.u32 %v419, 4294901760
      %421 = vmatpush1.msra.mxu0 %v420
      %422 = vmatprep.subr.mxu0 0.0
      %423 = vmatpush1.msra.mxu0 0.0
      %424 = vmatprep.subr.mxu0 0.0
      %425 = vmatpush1.msra.mxu0 0.0
      %426 = vmatprep.subr.mxu0 0.0
      %427 = vmatpush1.msra.mxu0 0.0
      %428 = vmatprep.subr.mxu0 0.0
      %429 = vmatpush1.msra.mxu0 0.0
      %430 = vmatprep.subr.mxu0 0.0
      %431 = vmatpush1.msra.mxu0 0.0
      %432 = vmatprep.subr.mxu0 0.0
      %433 = vmatpush1.msra.mxu0 0.0
      %434 = vmatprep.subr.mxu0 0.0
      %435 = vmatpush1.msra.mxu0 0.0
      %436 = vmatprep.subr.mxu0 0.0
      %437 = vmatpush1.msra.mxu0 0.0
      %438 = vmatprep.subr.mxu0 0.0
      %439 = vmatpush1.msra.mxu0 0.0
      %440 = vmatprep.subr.mxu0 0.0
      %441 = vmatpush1.msra.mxu0 0.0
      %442 = vmatprep.subr.mxu0 0.0
      %443 = vmatpush1.msra.mxu0 0.0
      %444 = vmatprep.subr.mxu0 0.0
      %445 = vmatpush1.msra.mxu0 0.0
      %446 = vmatprep.subr.mxu0 0.0
      %447 = vmatpush1.msra.mxu0 0.0
      %448 = vmatprep.subr.mxu0 0.0
      %449 = vmatpush1.msra.mxu0 0.0
      %450 = vmatprep.subr.mxu0 0.0
      %451 = vmatpush1.msra.mxu0 0.0
      %452 = vmatprep.subr.mxu0 0.0
      %453 = vmatpush1.msra.mxu0 0.0
      %454 = vmatprep.subr.mxu0 0.0
      %455 = vmatpush1.msra.mxu0 0.0
      %456 = vmatprep.subr.mxu0 0.0
      %457 = vmatpush1.msra.mxu0 0.0
      %458 = vmatprep.subr.mxu0 0.0
      %459 = vmatpush1.msra.mxu0 0.0
      %460 = vmatprep.subr.mxu0 0.0
      %461 = vmatpush1.msra.mxu0 0.0
      %462 = vmatprep.subr.mxu0 0.0
      %463 = vmatpush1.msra.mxu0 0.0
      %464 = vmatprep.subr.mxu0 0.0
      %465 = vmatpush1.msra.mxu0 0.0
      %466 = vmatprep.subr.mxu0 0.0
      %467 = vmatpush1.msra.mxu0 0.0
      %468 = vmatprep.subr.mxu0 0.0
      %469 = vmatpush1.msra.mxu0 0.0
      %470 = vmatprep.subr.mxu0 0.0
      %471 = vmatpush1.msra.mxu0 0.0
      %472 = vmatprep.subr.mxu0 0.0
      %473 = vmatpush1.msra.mxu0 0.0
      %474 = vmatprep.mubr.f32.mxu0 0.0
      %v475 = vand.u32 %v239, 4294901760
      %476 = vmatmul.mubr.f32.gmra.mrb[0].mxu0 %v475
      %v477 = vpop.f32.mrb[0].mxu0
      %v478 = vadd.f32 %v335, %v477
      %v479 = vpop.f32.mrb[0].mxu0
      %v480 = vadd.f32 %v337, %v479
      %481 = vmatprep.mubr.f32.mxu0 0.0
      %v482 = vand.u32 %v242, 4294901760
      %483 = vmatmul.mubr.f32.gmra.mrb[0].mxu0 %v482
      %v484 = vpop.f32.mrb[0].mxu0
      %v485 = vadd.f32 %v346, %v484
      %v486 = vpop.f32.mrb[0].mxu0
      %v487 = vadd.f32 %v348, %v486
      %488 = vdwg.mxu0
      %v489 = vand.u32 %v216, 4294901760
      %v490 = vsub.f32 %v216, %v489
      %491 = vmatprep.subr.mxu0 %v490
      %v492 = vand.u32 %v215, 4294901760
      %v493 = vsub.f32 %v215, %v492
      %494 = vmatpush1.msra.mxu0 %v493
      %v495 = vand.u32 %v218, 4294901760
      %v496 = vsub.f32 %v218, %v495
      %497 = vmatprep.subr.mxu0 %v496
      %v498 = vand.u32 %v217, 4294901760
      %v499 = vsub.f32 %v217, %v498
      %500 = vmatpush1.msra.mxu0 %v499
      %v501 = vand.u32 %v220, 4294901760
      %v502 = vsub.f32 %v220, %v501
      %503 = vmatprep.subr.mxu0 %v502
      %v504 = vand.u32 %v219, 4294901760
      %v505 = vsub.f32 %v219, %v504
      %506 = vmatpush1.msra.mxu0 %v505
      %v507 = vand.u32 %v222, 4294901760
      %v508 = vsub.f32 %v222, %v507
      %509 = vmatprep.subr.mxu0 %v508
      %v510 = vand.u32 %v221, 4294901760
      %v511 = vsub.f32 %v221, %v510
      %512 = vmatpush1.msra.mxu0 %v511
      %v513 = vand.u32 %v224, 4294901760
      %v514 = vsub.f32 %v224, %v513
      %515 = vmatprep.subr.mxu0 %v514
      %v516 = vand.u32 %v223, 4294901760
      %v517 = vsub.f32 %v223, %v516
      %518 = vmatpush1.msra.mxu0 %v517
      %v519 = vand.u32 %v249, 4294901760
      %v520 = vsub.f32 %v249, %v519
      %521 = vmatprep.subr.mxu0 %v520
      %v522 = vand.u32 %v246, 4294901760
      %v523 = vsub.f32 %v246, %v522
      %524 = vmatpush1.msra.mxu0 %v523
      %525 = vmatprep.subr.mxu0 0.0
      %526 = vmatpush1.msra.mxu0 0.0
      %527 = vmatprep.subr.mxu0 0.0
      %528 = vmatpush1.msra.mxu0 0.0
      %529 = vmatprep.subr.mxu0 0.0
      %530 = vmatpush1.msra.mxu0 0.0
      %531 = vmatprep.subr.mxu0 0.0
      %532 = vmatpush1.msra.mxu0 0.0
      %533 = vmatprep.subr.mxu0 0.0
      %534 = vmatpush1.msra.mxu0 0.0
      %535 = vmatprep.subr.mxu0 0.0
      %536 = vmatpush1.msra.mxu0 0.0
      %537 = vmatprep.subr.mxu0 0.0
      %538 = vmatpush1.msra.mxu0 0.0
      %539 = vmatprep.subr.mxu0 0.0
      %540 = vmatpush1.msra.mxu0 0.0
      %541 = vmatprep.subr.mxu0 0.0
      %542 = vmatpush1.msra.mxu0 0.0
      %543 = vmatprep.subr.mxu0 0.0
      %544 = vmatpush1.msra.mxu0 0.0
      %545 = vmatprep.subr.mxu0 0.0
      %546 = vmatpush1.msra.mxu0 0.0
      %547 = vmatprep.subr.mxu0 0.0
      %548 = vmatpush1.msra.mxu0 0.0
      %549 = vmatprep.subr.mxu0 0.0
      %550 = vmatpush1.msra.mxu0 0.0
      %551 = vmatprep.subr.mxu0 0.0
      %552 = vmatpush1.msra.mxu0 0.0
      %553 = vmatprep.subr.mxu0 0.0
      %554 = vmatpush1.msra.mxu0 0.0
      %555 = vmatprep.subr.mxu0 0.0
      %556 = vmatpush1.msra.mxu0 0.0
      %557 = vmatprep.subr.mxu0 0.0
      %558 = vmatpush1.msra.mxu0 0.0
      %559 = vmatprep.subr.mxu0 0.0
      %560 = vmatpush1.msra.mxu0 0.0
      %561 = vmatprep.subr.mxu0 0.0
      %562 = vmatpush1.msra.mxu0 0.0
      %563 = vmatprep.subr.mxu0 0.0
      %564 = vmatpush1.msra.mxu0 0.0
      %565 = vmatprep.subr.mxu0 0.0
      %566 = vmatpush1.msra.mxu0 0.0
      %567 = vmatprep.subr.mxu0 0.0
      %568 = vmatpush1.msra.mxu0 0.0
      %569 = vmatprep.subr.mxu0 0.0
      %570 = vmatpush1.msra.mxu0 0.0
      %571 = vmatprep.subr.mxu0 0.0
      %572 = vmatpush1.msra.mxu0 0.0
      %573 = vmatprep.subr.mxu0 0.0
      %574 = vmatpush1.msra.mxu0 0.0
      %575 = vmatprep.subr.mxu0 0.0
      %576 = vmatpush1.msra.mxu0 0.0
      %577 = vmatprep.mubr.f32.mxu0 0.0
      %v578 = vand.u32 %v239, 4294901760
      %v579 = vsub.f32 %v239, %v578
      %580 = vmatmul.mubr.f32.gmra.mrb[0].mxu0 %v579
      %v581 = vpop.f32.mrb[0].mxu0
      %v582 = vadd.f32 %v478, %v581
      %v583 = vpop.f32.mrb[0].mxu0
      %v584 = vadd.f32 %v480, %v583
      %585 = vmatprep.mubr.f32.mxu0 0.0
      %v586 = vand.u32 %v242, 4294901760
      %v587 = vsub.f32 %v242, %v586
      %588 = vmatmul.mubr.f32.gmra.mrb[0].mxu0 %v587
      %v589 = vpop.f32.mrb[0].mxu0
      %v590 = vadd.f32 %v485, %v589
      %v591 = vpop.f32.mrb[0].mxu0
      %v592 = vadd.f32 %v487, %v591
      %593 = vdwg.mxu0
      %v594 = vand.u32 %v216, 4294901760
      %595 = vmatprep.subr.mxu0 %v594
      %v596 = vand.u32 %v215, 4294901760
      %597 = vmatpush1.msra.mxu0 %v596
      %v598 = vand.u32 %v218, 4294901760
      %599 = vmatprep.subr.mxu0 %v598
      %v600 = vand.u32 %v217, 4294901760
      %601 = vmatpush1.msra.mxu0 %v600
      %v602 = vand.u32 %v220, 4294901760
      %603 = vmatprep.subr.mxu0 %v602
      %v604 = vand.u32 %v219, 4294901760
      %605 = vmatpush1.msra.mxu0 %v604
      %v606 = vand.u32 %v222, 4294901760
      %607 = vmatprep.subr.mxu0 %v606
      %v608 = vand.u32 %v221, 4294901760
      %609 = vmatpush1.msra.mxu0 %v608
      %v610 = vand.u32 %v224, 4294901760
      %611 = vmatprep.subr.mxu0 %v610
      %v612 = vand.u32 %v223, 4294901760
      %613 = vmatpush1.msra.mxu0 %v612
      %v614 = vand.u32 %v249, 4294901760
      %615 = vmatprep.subr.mxu0 %v614
      %v616 = vand.u32 %v246, 4294901760
      %617 = vmatpush1.msra.mxu0 %v616
      %618 = vmatprep.subr.mxu0 0.0
      %619 = vmatpush1.msra.mxu0 0.0
      %620 = vmatprep.subr.mxu0 0.0
      %621 = vmatpush1.msra.mxu0 0.0
      %622 = vmatprep.subr.mxu0 0.0
      %623 = vmatpush1.msra.mxu0 0.0
      %624 = vmatprep.subr.mxu0 0.0
      %625 = vmatpush1.msra.mxu0 0.0
      %626 = vmatprep.subr.mxu0 0.0
      %627 = vmatpush1.msra.mxu0 0.0
      %628 = vmatprep.subr.mxu0 0.0
      %629 = vmatpush1.msra.mxu0 0.0
      %630 = vmatprep.subr.mxu0 0.0
      %631 = vmatpush1.msra.mxu0 0.0
      %632 = vmatprep.subr.mxu0 0.0
      %633 = vmatpush1.msra.mxu0 0.0
      %634 = vmatprep.subr.mxu0 0.0
      %635 = vmatpush1.msra.mxu0 0.0
      %636 = vmatprep.subr.mxu0 0.0
      %637 = vmatpush1.msra.mxu0 0.0
      %638 = vmatprep.subr.mxu0 0.0
      %639 = vmatpush1.msra.mxu0 0.0
      %640 = vmatprep.subr.mxu0 0.0
      %641 = vmatpush1.msra.mxu0 0.0
      %642 = vmatprep.subr.mxu0 0.0
      %643 = vmatpush1.msra.mxu0 0.0
      %644 = vmatprep.subr.mxu0 0.0
      %645 = vmatpush1.msra.mxu0 0.0
      %646 = vmatprep.subr.mxu0 0.0
      %647 = vmatpush1.msra.mxu0 0.0
      %648 = vmatprep.subr.mxu0 0.0
      %649 = vmatpush1.msra.mxu0 0.0
      %650 = vmatprep.subr.mxu0 0.0
      %651 = vmatpush1.msra.mxu0 0.0
      %652 = vmatprep.subr.mxu0 0.0
      %653 = vmatpush1.msra.mxu0 0.0
      %654 = vmatprep.subr.mxu0 0.0
      %655 = vmatpush1.msra.mxu0 0.0
      %656 = vmatprep.subr.mxu0 0.0
      %657 = vmatpush1.msra.mxu0 0.0
      %658 = vmatprep.subr.mxu0 0.0
      %659 = vmatpush1.msra.mxu0 0.0
      %660 = vmatprep.subr.mxu0 0.0
      %661 = vmatpush1.msra.mxu0 0.0
      %662 = vmatprep.subr.mxu0 0.0
      %663 = vmatpush1.msra.mxu0 0.0
      %664 = vmatprep.subr.mxu0 0.0
      %665 = vmatpush1.msra.mxu0 0.0
      %666 = vmatprep.subr.mxu0 0.0
      %667 = vmatpush1.msra.mxu0 0.0
      %668 = vmatprep.subr.mxu0 0.0
      %669 = vmatpush1.msra.mxu0 0.0
      %670 = vmatprep.mubr.f32.mxu0 0.0
      %v671 = vand.u32 %v239, 4294901760
      %v672 = vsub.f32 %v239, %v671
      %v673 = vand.u32 %v672, 4294901760
      %674 = vmatmul.mubr.f32.gmra.mrb[0].mxu0 %v673
      %v675 = vpop.f32.mrb[0].mxu0
      %v676 = vadd.f32 %v582, %v675
      %v677 = vpop.f32.mrb[0].mxu0
      %v678 = vadd.f32 %v584, %v677
      %679 = vmatprep.mubr.f32.mxu0 0.0
      %v680 = vand.u32 %v242, 4294901760
      %v681 = vsub.f32 %v242, %v680
      %v682 = vand.u32 %v681, 4294901760
      %683 = vmatmul.mubr.f32.gmra.mrb[0].mxu0 %v682
      %v684 = vpop.f32.mrb[0].mxu0
      %v685 = vadd.f32 %v590, %v684
      %v686 = vpop.f32.mrb[0].mxu0
      %v687 = vadd.f32 %v592, %v686
      %688 = vdwg.mxu0
      %v689 = vand.u32 %v216, 4294901760
      %v690 = vsub.f32 %v216, %v689
      %v691 = vand.u32 %v690, 4294901760
      %692 = vmatprep.subr.mxu0 %v691
      %v693 = vand.u32 %v215, 4294901760
      %v694 = vsub.f32 %v215, %v693
      %v695 = vand.u32 %v694, 4294901760
      %696 = vmatpush1.msra.mxu0 %v695
      %v697 = vand.u32 %v218, 4294901760
      %v698 = vsub.f32 %v218, %v697
      %v699 = vand.u32 %v698, 4294901760
      %700 = vmatprep.subr.mxu0 %v699
      %v701 = vand.u32 %v217, 4294901760
      %v702 = vsub.f32 %v217, %v701
      %v703 = vand.u32 %v702, 4294901760
      %704 = vmatpush1.msra.mxu0 %v703
      %v705 = vand.u32 %v220, 4294901760
      %v706 = vsub.f32 %v220, %v705
      %v707 = vand.u32 %v706, 4294901760
      %708 = vmatprep.subr.mxu0 %v707
      %v709 = vand.u32 %v219, 4294901760
      %v710 = vsub.f32 %v219, %v709
      %v711 = vand.u32 %v710, 4294901760
      %712 = vmatpush1.msra.mxu0 %v711
      %v713 = vand.u32 %v222, 4294901760
      %v714 = vsub.f32 %v222, %v713
      %v715 = vand.u32 %v714, 4294901760
      %716 = vmatprep.subr.mxu0 %v715
      %v717 = vand.u32 %v221, 4294901760
      %v718 = vsub.f32 %v221, %v717
      %v719 = vand.u32 %v718, 4294901760
      %720 = vmatpush1.msra.mxu0 %v719
      %v721 = vand.u32 %v224, 4294901760
      %v722 = vsub.f32 %v224, %v721
      %v723 = vand.u32 %v722, 4294901760
      %724 = vmatprep.subr.mxu0 %v723
      %v725 = vand.u32 %v223, 4294901760
      %v726 = vsub.f32 %v223, %v725
      %v727 = vand.u32 %v726, 4294901760
      %728 = vmatpush1.msra.mxu0 %v727
      %v729 = vand.u32 %v249, 4294901760
      %v730 = vsub.f32 %v249, %v729
      %v731 = vand.u32 %v730, 4294901760
      %732 = vmatprep.subr.mxu0 %v731
      %v733 = vand.u32 %v246, 4294901760
      %v734 = vsub.f32 %v246, %v733
      %v735 = vand.u32 %v734, 4294901760
      %736 = vmatpush1.msra.mxu0 %v735
      %737 = vmatprep.subr.mxu0 0.0
      %738 = vmatpush1.msra.mxu0 0.0
      %739 = vmatprep.subr.mxu0 0.0
      %740 = vmatpush1.msra.mxu0 0.0
      %741 = vmatprep.subr.mxu0 0.0
      %742 = vmatpush1.msra.mxu0 0.0
      %743 = vmatprep.subr.mxu0 0.0
      %744 = vmatpush1.msra.mxu0 0.0
      %745 = vmatprep.subr.mxu0 0.0
      %746 = vmatpush1.msra.mxu0 0.0
      %747 = vmatprep.subr.mxu0 0.0
      %748 = vmatpush1.msra.mxu0 0.0
      %749 = vmatprep.subr.mxu0 0.0
      %750 = vmatpush1.msra.mxu0 0.0
      %751 = vmatprep.subr.mxu0 0.0
      %752 = vmatpush1.msra.mxu0 0.0
      %753 = vmatprep.subr.mxu0 0.0
      %754 = vmatpush1.msra.mxu0 0.0
      %755 = vmatprep.subr.mxu0 0.0
      %756 = vmatpush1.msra.mxu0 0.0
      %757 = vmatprep.subr.mxu0 0.0
      %758 = vmatpush1.msra.mxu0 0.0
      %759 = vmatprep.subr.mxu0 0.0
      %760 = vmatpush1.msra.mxu0 0.0
      %761 = vmatprep.subr.mxu0 0.0
      %762 = vmatpush1.msra.mxu0 0.0
      %763 = vmatprep.subr.mxu0 0.0
      %764 = vmatpush1.msra.mxu0 0.0
      %765 = vmatprep.subr.mxu0 0.0
      %766 = vmatpush1.msra.mxu0 0.0
      %767 = vmatprep.subr.mxu0 0.0
      %768 = vmatpush1.msra.mxu0 0.0
      %769 = vmatprep.subr.mxu0 0.0
      %770 = vmatpush1.msra.mxu0 0.0
      %771 = vmatprep.subr.mxu0 0.0
      %772 = vmatpush1.msra.mxu0 0.0
      %773 = vmatprep.subr.mxu0 0.0
      %774 = vmatpush1.msra.mxu0 0.0
      %775 = vmatprep.subr.mxu0 0.0
      %776 = vmatpush1.msra.mxu0 0.0
      %777 = vmatprep.subr.mxu0 0.0
      %778 = vmatpush1.msra.mxu0 0.0
      %779 = vmatprep.subr.mxu0 0.0
      %780 = vmatpush1.msra.mxu0 0.0
      %781 = vmatprep.subr.mxu0 0.0
      %782 = vmatpush1.msra.mxu0 0.0
      %783 = vmatprep.subr.mxu0 0.0
      %784 = vmatpush1.msra.mxu0 0.0
      %785 = vmatprep.subr.mxu0 0.0
      %786 = vmatpush1.msra.mxu0 0.0
      %787 = vmatprep.subr.mxu0 0.0
      %788 = vmatpush1.msra.mxu0 0.0
      %789 = vmatprep.mubr.f32.mxu0 0.0
      %v790 = vand.u32 %v239, 4294901760
      %791 = vmatmul.mubr.f32.gmra.mrb[0].mxu0 %v790
      %v792 = vpop.f32.mrb[0].mxu0
      %v793 = vadd.f32 %v676, %v792
      %v794 = vpop.f32.mrb[0].mxu0
      %v795 = vadd.f32 %v678, %v794
      %796 = vmatprep.mubr.f32.mxu0 0.0
      %v797 = vand.u32 %v242, 4294901760
      %798 = vmatmul.mubr.f32.gmra.mrb[0].mxu0 %v797
      %v799 = vpop.f32.mrb[0].mxu0
      %v800 = vadd.f32 %v685, %v799
      %v801 = vpop.f32.mrb[0].mxu0
      %v802 = vadd.f32 %v687, %v801
      %803 = vdwg.mxu0
      %v804 = vand.u32 %v216, 4294901760
      %805 = vmatprep.subr.mxu0 %v804
      %v806 = vand.u32 %v215, 4294901760
      %807 = vmatpush1.msra.mxu0 %v806
      %v808 = vand.u32 %v218, 4294901760
      %809 = vmatprep.subr.mxu0 %v808
      %v810 = vand.u32 %v217, 4294901760
      %811 = vmatpush1.msra.mxu0 %v810
      %v812 = vand.u32 %v220, 4294901760
      %813 = vmatprep.subr.mxu0 %v812
      %v814 = vand.u32 %v219, 4294901760
      %815 = vmatpush1.msra.mxu0 %v814
      %v816 = vand.u32 %v222, 4294901760
      %817 = vmatprep.subr.mxu0 %v816
      %v818 = vand.u32 %v221, 4294901760
      %819 = vmatpush1.msra.mxu0 %v818
      %v820 = vand.u32 %v224, 4294901760
      %821 = vmatprep.subr.mxu0 %v820
      %v822 = vand.u32 %v223, 4294901760
      %823 = vmatpush1.msra.mxu0 %v822
      %v824 = vand.u32 %v249, 4294901760
      %825 = vmatprep.subr.mxu0 %v824
      %v826 = vand.u32 %v246, 4294901760
      %827 = vmatpush1.msra.mxu0 %v826
      %828 = vmatprep.subr.mxu0 0.0
      %829 = vmatpush1.msra.mxu0 0.0
      %830 = vmatprep.subr.mxu0 0.0
      %831 = vmatpush1.msra.mxu0 0.0
      %832 = vmatprep.subr.mxu0 0.0
      %833 = vmatpush1.msra.mxu0 0.0
      %834 = vmatprep.subr.mxu0 0.0
      %835 = vmatpush1.msra.mxu0 0.0
      %836 = vmatprep.subr.mxu0 0.0
      %837 = vmatpush1.msra.mxu0 0.0
      %838 = vmatprep.subr.mxu0 0.0
      %839 = vmatpush1.msra.mxu0 0.0
      %840 = vmatprep.subr.mxu0 0.0
      %841 = vmatpush1.msra.mxu0 0.0
      %842 = vmatprep.subr.mxu0 0.0
      %843 = vmatpush1.msra.mxu0 0.0
      %844 = vmatprep.subr.mxu0 0.0
      %845 = vmatpush1.msra.mxu0 0.0
      %846 = vmatprep.subr.mxu0 0.0
      %847 = vmatpush1.msra.mxu0 0.0
      %848 = vmatprep.subr.mxu0 0.0
      %849 = vmatpush1.msra.mxu0 0.0
      %850 = vmatprep.subr.mxu0 0.0
      %851 = vmatpush1.msra.mxu0 0.0
      %852 = vmatprep.subr.mxu0 0.0
      %853 = vmatpush1.msra.mxu0 0.0
      %854 = vmatprep.subr.mxu0 0.0
      %855 = vmatpush1.msra.mxu0 0.0
      %856 = vmatprep.subr.mxu0 0.0
      %857 = vmatpush1.msra.mxu0 0.0
      %858 = vmatprep.subr.mxu0 0.0
      %859 = vmatpush1.msra.mxu0 0.0
      %860 = vmatprep.subr.mxu0 0.0
      %861 = vmatpush1.msra.mxu0 0.0
      %862 = vmatprep.subr.mxu0 0.0
      %863 = vmatpush1.msra.mxu0 0.0
      %864 = vmatprep.subr.mxu0 0.0
      %865 = vmatpush1.msra.mxu0 0.0
      %866 = vmatprep.subr.mxu0 0.0
      %867 = vmatpush1.msra.mxu0 0.0
      %868 = vmatprep.subr.mxu0 0.0
      %869 = vmatpush1.msra.mxu0 0.0
      %870 = vmatprep.subr.mxu0 0.0
      %871 = vmatpush1.msra.mxu0 0.0
      %872 = vmatprep.subr.mxu0 0.0
      %873 = vmatpush1.msra.mxu0 0.0
      %874 = vmatprep.subr.mxu0 0.0
      %875 = vmatpush1.msra.mxu0 0.0
      %876 = vmatprep.subr.mxu0 0.0
      %877 = vmatpush1.msra.mxu0 0.0
      %878 = vmatprep.subr.mxu0 0.0
      %879 = vmatpush1.msra.mxu0 0.0
      %880 = vmatprep.mubr.f32.mxu0 0.0
      %v881 = vand.u32 %v239, 4294901760
      %882 = vmatmul.mubr.f32.gmra.mrb[0].mxu0 %v881
      %v883 = vpop.f32.mrb[0].mxu0
      %v884 = vadd.f32 %v793, %v883
      %v885 = vpop.f32.mrb[0].mxu0
      %v886 = vadd.f32 %v795, %v885
      %887 = vmatprep.mubr.f32.mxu0 0.0
      %v888 = vand.u32 %v242, 4294901760
      %889 = vmatmul.mubr.f32.gmra.mrb[0].mxu0 %v888
      %v890 = vpop.f32.mrb[0].mxu0
      %v891 = vadd.f32 %v800, %v890
      %v892 = vpop.f32.mrb[0].mxu0
      %v893 = vadd.f32 %v802, %v892
      %894 = vdwg.mxu0
      %v895 = vtanh.pop %v884
      %v896 = vtanh.pop %v886
      %v897 = vtanh.pop %v891
      %v898 = vtanh.pop %v893
      %899 = vset.pattern.permute.xlu0 1
      %900 = vperm.xlu0 %899, %v198
      %v901 = vpop.permute.xlu0 %900
      %903 = vset.pattern.permute.xlu0 1
      %904 = vperm.xlu0 %903, %v199
      %v905 = vpop.permute.xlu0 %904
      %v907 = vmul.f32 %v895, %v901
      %v908 = vmul.f32 %v896, %v901
      %v909 = vmul.f32 %v897, %v905
      %v910 = vmul.f32 %v898, %v905
      %vm911 = vcmask 1040384
      %v912 = vsel %vm911, %v909, 0.0
      %v913 = vadd.f32 %v907, %v912
      %v914 = vrot.slane %v913, 4
      %v915 = vadd.f32 %v913, %v914
      %v916 = vrot.slane %v915, 2
      %v917 = vadd.f32 %v915, %v916
      %v918 = vrot.slane %v917, 1
      %v919 = vadd.f32 %v917, %v918
      %vm920 = vcmask 654336
      %v921 = vsel %vm920, %v908, 0.0
      %vm922 = vcmask 647168
      %v923 = vsel %vm922, %v910, 0.0
      %v924 = vadd.f32 %v921, %v923
      %v925 = vrot.slane %v924, 4
      %v926 = vadd.f32 %v924, %v925
      %v927 = vrot.slane %v926, 2
      %v928 = vadd.f32 %v926, %v927
      %v929 = vrot.slane %v928, 1
      %v930 = vadd.f32 %v928, %v929
      %931 = vset.pattern.permute.xlu0 5
      %932 = vperm.xlu0 %931, %v198
      %v933 = vpop.permute.xlu0 %932
      %v935 = vadd.f32 %v919, %v933
      %v936 = vadd.f32 %v930, %v933
      %v937 = vtanh.pop %v935
      %v938 = vtanh.pop %v936
      %v939 = vlaneseq
      %v940 = vshrl.u32 %v939, 7
      %v941 = vsub.s32 0, %v940
      %v942 = vrot.slane %v937, %v941
      %v943 = vlaneseq
      %v944 = vshrl.u32 %v943, 7
      %v945 = vsub.s32 0, %v944
      %v946 = vrot.slane %v938, %v945
      %947 = vset.pattern.permute.xlu0 2
      %948 = vperm.xlu0 %947, %v198
      %v949 = vpop.permute.xlu0 %948
      %951 = vset.pattern.permute.xlu0 2
      %952 = vperm.xlu0 %951, %v199
      %v953 = vpop.permute.xlu0 %952
      %956 = vset.pattern.permute.xlu0 2
      %957 = vperm.xlu0 %956, %v200
      %v958 = vpop.permute.xlu0 %957
      %961 = vset.pattern.permute.xlu0 2
      %962 = vperm.xlu0 %961, %v201
      %v963 = vpop.permute.xlu0 %962
      %966 = vset.pattern.permute.xlu0 2
      %967 = vperm.xlu0 %966, %v202
      %v968 = vpop.permute.xlu0 %967
      %971 = vset.pattern.permute.xlu0 2
      %972 = vperm.xlu0 %971, %v203
      %v973 = vpop.permute.xlu0 %972
      %v975 = vmul.f32 %v942, %v949
      %v976 = vmul.f32 %v946, %v949
      %v977 = vmul.f32 %v942, %v953
      %v978 = vmul.f32 %v946, %v953
      %v979 = vmul.f32 %v942, %v958
      %v980 = vmul.f32 %v946, %v958
      %v981 = vmul.f32 %v942, %v963
      %v982 = vmul.f32 %v946, %v963
      %v983 = vmul.f32 %v942, %v968
      %v984 = vmul.f32 %v946, %v968
      %v985 = vmul.f32 %v942, %v973
      %v986 = vmul.f32 %v946, %v973
      %987 = vset.pattern.permute.xlu0 3
      %988 = vperm.xlu0 %987, %v198
      %v989 = vpop.permute.xlu0 %988
      %991 = vset.pattern.permute.xlu0 3
      %992 = vperm.xlu0 %991, %v199
      %v993 = vpop.permute.xlu0 %992
      %995 = vset.pattern.permute.xlu0 3
      %996 = vperm.xlu0 %995, %v200
      %v997 = vpop.permute.xlu0 %996
      %999 = vset.pattern.permute.xlu0 3
      %1000 = vperm.xlu0 %999, %v201
      %v1001 = vpop.permute.xlu0 %1000
      %1003 = vset.pattern.permute.xlu0 3
      %1004 = vperm.xlu0 %1003, %v202
      %v1005 = vpop.permute.xlu0 %1004
      %1007 = vset.pattern.permute.xlu0 3
      %1008 = vperm.xlu0 %1007, %v203
      %v1009 = vpop.permute.xlu0 %1008
      %v1011 = vadd.f32 %v975, %v989
      %v1012 = vadd.f32 %v976, %v989
      %v1013 = vadd.f32 %v977, %v993
      %v1014 = vadd.f32 %v978, %v993
      %v1015 = vadd.f32 %v979, %v997
      %v1016 = vadd.f32 %v980, %v997
      %v1017 = vadd.f32 %v981, %v1001
      %v1018 = vadd.f32 %v982, %v1001
      %v1019 = vadd.f32 %v983, %v1005
      %v1020 = vadd.f32 %v984, %v1005
      %v1021 = vadd.f32 %v985, %v1009
      %v1022 = vadd.f32 %v986, %v1009
      %v1023 = vtanh.pop %v1011
      %v1024 = vtanh.pop %v1012
      %v1025 = vtanh.pop %v1013
      %v1026 = vtanh.pop %v1014
      %v1027 = vtanh.pop %v1015
      %v1028 = vtanh.pop %v1016
      %v1029 = vtanh.pop %v1017
      %v1030 = vtanh.pop %v1018
      %v1031 = vtanh.pop %v1019
      %v1032 = vtanh.pop %v1020
      %v1033 = vtanh.pop %v1021
      %v1034 = vtanh.pop %v1022
      %1035 = vset.pattern.permute.xlu0 4
      %1036 = vperm.xlu0 %1035, %v198
      %v1037 = vpop.permute.xlu0 %1036
      %1039 = vset.pattern.permute.xlu0 4
      %1040 = vperm.xlu0 %1039, %v199
      %v1041 = vpop.permute.xlu0 %1040
      %1043 = vset.pattern.permute.xlu0 4
      %1044 = vperm.xlu0 %1043, %v200
      %v1045 = vpop.permute.xlu0 %1044
      %1047 = vset.pattern.permute.xlu0 4
      %1048 = vperm.xlu0 %1047, %v201
      %v1049 = vpop.permute.xlu0 %1048
      %1051 = vset.pattern.permute.xlu0 4
      %1052 = vperm.xlu0 %1051, %v202
      %v1053 = vpop.permute.xlu0 %1052
      %1055 = vset.pattern.permute.xlu0 4
      %1056 = vperm.xlu0 %1055, %v203
      %v1057 = vpop.permute.xlu0 %1056
      %v1059 = vmul.f32 %v1023, %v1037
      %v1060 = vmul.f32 %v1024, %v1037
      %v1061 = vmul.f32 %v1025, %v1041
      %v1062 = vmul.f32 %v1026, %v1041
      %v1063 = vmul.f32 %v1027, %v1045
      %v1064 = vmul.f32 %v1028, %v1045
      %v1065 = vmul.f32 %v1029, %v1049
      %v1066 = vmul.f32 %v1030, %v1049
      %v1067 = vmul.f32 %v1031, %v1053
      %v1068 = vmul.f32 %v1032, %v1053
      %v1069 = vmul.f32 %v1033, %v1057
      %v1070 = vmul.f32 %v1034, %v1057
      %v1071 = vadd.f32 %v1059, %v1061
      %v1072 = vadd.f32 %v1071, %v1063
      %v1073 = vadd.f32 %v1072, %v1065
      %v1074 = vadd.f32 %v1073, %v1067
      %v1075 = vsel %vm244, %v1069, 0.0
      %v1076 = vadd.f32 %v1074, %v1075
      %v1077 = vrot.slane %v1076, 4
      %v1078 = vadd.f32 %v1076, %v1077
      %v1079 = vrot.slane %v1078, 2
      %v1080 = vadd.f32 %v1078, %v1079
      %v1081 = vrot.slane %v1080, 1
      %v1082 = vadd.f32 %v1080, %v1081
      %v1083 = vsel %vm920, %v1060, 0.0
      %v1084 = vsel %vm920, %v1062, 0.0
      %v1085 = vadd.f32 %v1083, %v1084
      %v1086 = vsel %vm920, %v1064, 0.0
      %v1087 = vadd.f32 %v1085, %v1086
      %v1088 = vsel %vm920, %v1066, 0.0
      %v1089 = vadd.f32 %v1087, %v1088
      %v1090 = vsel %vm920, %v1068, 0.0
      %v1091 = vadd.f32 %v1089, %v1090
      %vm1092 = vcmask 653312
      %v1093 = vsel %vm1092, %v1070, 0.0
      %v1094 = vadd.f32 %v1091, %v1093
      %v1095 = vrot.slane %v1094, 4
      %v1096 = vadd.f32 %v1094, %v1095
      %v1097 = vrot.slane %v1096, 2
      %v1098 = vadd.f32 %v1096, %v1097
      %v1099 = vrot.slane %v1098, 1
      %v1100 = vadd.f32 %v1098, %v1099
      %v1101 = vadd.f32 %v1082, %v933
      %v1102 = vadd.f32 %v1100, %v933
      %v1103 = vtanh.pop %v1101
      %v1104 = vtanh.pop %v1102
      %v1107 = vcombine.low %v1103, %v1104
      %v1109 = vunpack.c.l.s4 1966171168
      %v1110 = vunpack.c.0.s8 %v1109
      %v1111 = vlaneseq
      %v1112 = vshrl.u32 %v1111, 7
      %v1113 = vsub.s32 %v1110, %v1112
      %v1114 = vrot.slane %v1107, %v1113
      %v1115 = vcombine.high %v1114, %v1114
      %v1117 = vunpack.c.l.s4 1966171168
      %v1118 = vunpack.c.0.s8 %v1117
      %v1119 = vlaneseq
      %v1120 = vshrl.u32 %v1119, 7
      %v1121 = vsub.s32 %v1118, %v1120
      %v1122 = vrot.slane %v1115, %v1121
      %vm1124 = vcmp.lt.s32.totalorder %v210, 208
      %vm1125 = vmand %vm211, %vm1124
      %1126 = vst.msk [vmem:[#allocation2] sm:$0x3] %vm1125, %v1122
      %v1127 = vld [vmem:[#allocation2] sm:$0x3]
      %1129 = vset.pattern.permute.xlu0 9
      %1130 = vperm.xlu0 %1129, %v206
      %v1131 = vpop.permute.xlu0 %1130
      %1134 = vset.pattern.permute.xlu0 9
      %1135 = vperm.xlu0 %1134, %v207
      %v1136 = vpop.permute.xlu0 %1135
      %1139 = vset.pattern.permute.xlu0 9
      %1140 = vperm.xlu0 %1139, %v208
      %v1141 = vpop.permute.xlu0 %1140
      %1144 = vset.pattern.permute.xlu0 9
      %1145 = vperm.xlu0 %1144, %v209
      %v1146 = vpop.permute.xlu0 %1145
      %1148 = vset.pattern.permute.xlu0 0
      %1149 = vperm.xlu0 %1148, %v206
      %v1150 = vpop.permute.xlu0 %1149
      %1152 = vset.pattern.permute.xlu0 0
      %1153 = vperm.xlu0 %1152, %v207
      %v1154 = vpop.permute.xlu0 %1153
      %1156 = vset.pattern.permute.xlu0 0
      %1157 = vperm.xlu0 %1156, %v208
      %v1158 = vpop.permute.xlu0 %1157
      %1160 = vset.pattern.permute.xlu0 0
      %1161 = vperm.xlu0 %1160, %v209
      %v1162 = vpop.permute.xlu0 %1161
      %v1165 = vlaneseq
      %v1166 = vshrl.u32 %v1165, 7
      %v1167 = vsub.s32 0, %v1166
      %v1168 = vrot.slane %v1127, %v1167
      %v1169 = vlaneseq
      %v1170 = vshrl.u32 %v1169, 7
      %v1171 = vsub.s32 1, %v1170
      %v1172 = vrot.slane %v1127, %v1171
      %v1175 = vmul.f32 %v1150, %v1168
      %v1176 = vmul.f32 %v1150, %v1172
      %v1177 = vmul.f32 %v1154, %v1168
      %v1178 = vmul.f32 %v1154, %v1172
      %v1179 = vmul.f32 %v1158, %v1168
      %v1180 = vmul.f32 %v1158, %v1172
      %v1181 = vmul.f32 %v1162, %v1168
      %v1182 = vmul.f32 %v1162, %v1172
      %v1183 = vadd.f32 %v1131, %v1175
      %v1184 = vadd.f32 %v1131, %v1176
      %v1185 = vadd.f32 %v1136, %v1177
      %v1186 = vadd.f32 %v1136, %v1178
      %v1187 = vadd.f32 %v1141, %v1179
      %v1188 = vadd.f32 %v1141, %v1180
      %v1189 = vadd.f32 %v1146, %v1181
      %v1190 = vadd.f32 %v1146, %v1182
      %1191 = vset.pattern.permute.xlu0 1
      %1192 = vperm.xlu0 %1191, %v206
      %v1193 = vpop.permute.xlu0 %1192
      %1195 = vset.pattern.permute.xlu0 1
      %1196 = vperm.xlu0 %1195, %v207
      %v1197 = vpop.permute.xlu0 %1196
      %1199 = vset.pattern.permute.xlu0 1
      %1200 = vperm.xlu0 %1199, %v208
      %v1201 = vpop.permute.xlu0 %1200
      %1203 = vset.pattern.permute.xlu0 1
      %1204 = vperm.xlu0 %1203, %v209
      %v1205 = vpop.permute.xlu0 %1204
      %v1207 = vmul.f32 %v1193, %v1168
      %v1208 = vmul.f32 %v1193, %v1172
      %v1209 = vmul.f32 %v1197, %v1168
      %v1210 = vmul.f32 %v1197, %v1172
      %v1211 = vmul.f32 %v1201, %v1168
      %v1212 = vmul.f32 %v1201, %v1172
      %v1213 = vmul.f32 %v1205, %v1168
      %v1214 = vmul.f32 %v1205, %v1172
      %1223 = vrot.lane.b32.xlu0 %v1207, 127
      %v1224 = vpop.permute.xlu0 %1223
      %1225 = vrot.lane.b32.xlu0 %v1208, 127
      %v1226 = vpop.permute.xlu0 %1225
      %1227 = vrot.lane.b32.xlu0 %v1209, 127
      %v1228 = vpop.permute.xlu0 %1227
      %1229 = vrot.lane.b32.xlu0 %v1210, 127
      %v1230 = vpop.permute.xlu0 %1229
      %1231 = vrot.lane.b32.xlu0 %v1211, 127
      %v1232 = vpop.permute.xlu0 %1231
      %1233 = vrot.lane.b32.xlu0 %v1212, 127
      %v1234 = vpop.permute.xlu0 %1233
      %1235 = vrot.lane.b32.xlu0 %v1213, 127
      %v1236 = vpop.permute.xlu0 %1235
      %1237 = vrot.lane.b32.xlu0 %v1214, 127
      %v1238 = vpop.permute.xlu0 %1237
      %vm1239 = vcmask 1039360
      %v1240 = vsel %vm1239, %v1224, %v1226
      %v1241 = vsel %vm1239, %v1228, %v1230
      %v1242 = vsel %vm1239, %v1232, %v1234
      %v1243 = vsel %vm1239, %v1236, %v1238
      %v1252 = vadd.f32 %v1183, %v1240
      %v1253 = vadd.f32 %v1184, %v1226
      %v1254 = vadd.f32 %v1185, %v1241
      %v1255 = vadd.f32 %v1186, %v1230
      %v1256 = vadd.f32 %v1187, %v1242
      %v1257 = vadd.f32 %v1188, %v1234
      %v1258 = vadd.f32 %v1189, %v1243
      %v1259 = vadd.f32 %v1190, %v1238
      %1260 = vset.pattern.permute.xlu0 2
      %1261 = vperm.xlu0 %1260, %v206
      %v1262 = vpop.permute.xlu0 %1261
      %1264 = vset.pattern.permute.xlu0 2
      %1265 = vperm.xlu0 %1264, %v207
      %v1266 = vpop.permute.xlu0 %1265
      %1268 = vset.pattern.permute.xlu0 2
      %1269 = vperm.xlu0 %1268, %v208
      %v1270 = vpop.permute.xlu0 %1269
      %1272 = vset.pattern.permute.xlu0 2
      %1273 = vperm.xlu0 %1272, %v209
      %v1274 = vpop.permute.xlu0 %1273
      %v1276 = vmul.f32 %v1262, %v1168
      %v1277 = vmul.f32 %v1262, %v1172
      %v1278 = vmul.f32 %v1266, %v1168
      %v1279 = vmul.f32 %v1266, %v1172
      %v1280 = vmul.f32 %v1270, %v1168
      %v1281 = vmul.f32 %v1270, %v1172
      %v1282 = vmul.f32 %v1274, %v1168
      %v1283 = vmul.f32 %v1274, %v1172
      %1292 = vrot.lane.b32.xlu0 %v1276, 126
      %v1293 = vpop.permute.xlu0 %1292
      %1294 = vrot.lane.b32.xlu0 %v1277, 126
      %v1295 = vpop.permute.xlu0 %1294
      %1296 = vrot.lane.b32.xlu0 %v1278, 126
      %v1297 = vpop.permute.xlu0 %1296
      %1298 = vrot.lane.b32.xlu0 %v1279, 126
      %v1299 = vpop.permute.xlu0 %1298
      %1300 = vrot.lane.b32.xlu0 %v1280, 126
      %v1301 = vpop.permute.xlu0 %1300
      %1302 = vrot.lane.b32.xlu0 %v1281, 126
      %v1303 = vpop.permute.xlu0 %1302
      %1304 = vrot.lane.b32.xlu0 %v1282, 126
      %v1305 = vpop.permute.xlu0 %1304
      %1306 = vrot.lane.b32.xlu0 %v1283, 126
      %v1307 = vpop.permute.xlu0 %1306
      %vm1308 = vcmask 1031168
      %v1309 = vsel %vm1308, %v1293, %v1295
      %v1310 = vsel %vm1308, %v1297, %v1299
      %v1311 = vsel %vm1308, %v1301, %v1303
      %v1312 = vsel %vm1308, %v1305, %v1307
      %v1321 = vadd.f32 %v1252, %v1309
      %v1322 = vadd.f32 %v1253, %v1295
      %v1323 = vadd.f32 %v1254, %v1310
      %v1324 = vadd.f32 %v1255, %v1299
      %v1325 = vadd.f32 %v1256, %v1311
      %v1326 = vadd.f32 %v1257, %v1303
      %v1327 = vadd.f32 %v1258, %v1312
      %v1328 = vadd.f32 %v1259, %v1307
      %1329 = vset.pattern.permute.xlu0 3
      %1330 = vperm.xlu0 %1329, %v206
      %v1331 = vpop.permute.xlu0 %1330
      %1333 = vset.pattern.permute.xlu0 3
      %1334 = vperm.xlu0 %1333, %v207
      %v1335 = vpop.permute.xlu0 %1334
      %1337 = vset.pattern.permute.xlu0 3
      %1338 = vperm.xlu0 %1337, %v208
      %v1339 = vpop.permute.xlu0 %1338
      %1341 = vset.pattern.permute.xlu0 3
      %1342 = vperm.xlu0 %1341, %v209
      %v1343 = vpop.permute.xlu0 %1342
      %v1345 = vmul.f32 %v1331, %v1168
      %v1346 = vmul.f32 %v1331, %v1172
      %v1347 = vmul.f32 %v1335, %v1168
      %v1348 = vmul.f32 %v1335, %v1172
      %v1349 = vmul.f32 %v1339, %v1168
      %v1350 = vmul.f32 %v1339, %v1172
      %v1351 = vmul.f32 %v1343, %v1168
      %v1352 = vmul.f32 %v1343, %v1172
      %1361 = vrot.lane.b32.xlu0 %v1345, 115
      %v1362 = vpop.permute.xlu0 %1361
      %1363 = vrot.lane.b32.xlu0 %v1346, 115
      %v1364 = vpop.permute.xlu0 %1363
      %1365 = vrot.lane.b32.xlu0 %v1347, 115
      %v1366 = vpop.permute.xlu0 %1365
      %1367 = vrot.lane.b32.xlu0 %v1348, 115
      %v1368 = vpop.permute.xlu0 %1367
      %1369 = vrot.lane.b32.xlu0 %v1349, 115
      %v1370 = vpop.permute.xlu0 %1369
      %1371 = vrot.lane.b32.xlu0 %v1350, 115
      %v1372 = vpop.permute.xlu0 %1371
      %1373 = vrot.lane.b32.xlu0 %v1351, 115
      %v1374 = vpop.permute.xlu0 %1373
      %1375 = vrot.lane.b32.xlu0 %v1352, 115
      %v1376 = vpop.permute.xlu0 %1375
      %vm1377 = vcmask 941056
      %v1378 = vsel %vm1377, %v1362, %v1364
      %v1379 = vsel %vm1377, %v1366, %v1368
      %v1380 = vsel %vm1377, %v1370, %v1372
      %v1381 = vsel %vm1377, %v1374, %v1376
      %v1390 = vadd.f32 %v1321, %v1378
      %v1391 = vadd.f32 %v1322, %v1364
      %v1392 = vadd.f32 %v1323, %v1379
      %v1393 = vadd.f32 %v1324, %v1368
      %v1394 = vadd.f32 %v1325, %v1380
      %v1395 = vadd.f32 %v1326, %v1372
      %v1396 = vadd.f32 %v1327, %v1381
      %v1397 = vadd.f32 %v1328, %v1376
      %1398 = vset.pattern.permute.xlu0 4
      %1399 = vperm.xlu0 %1398, %v206
      %v1400 = vpop.permute.xlu0 %1399
      %1402 = vset.pattern.permute.xlu0 4
      %1403 = vperm.xlu0 %1402, %v207
      %v1404 = vpop.permute.xlu0 %1403
      %1406 = vset.pattern.permute.xlu0 4
      %1407 = vperm.xlu0 %1406, %v208
      %v1408 = vpop.permute.xlu0 %1407
      %1410 = vset.pattern.permute.xlu0 4
      %1411 = vperm.xlu0 %1410, %v209
      %v1412 = vpop.permute.xlu0 %1411
      %v1414 = vmul.f32 %v1400, %v1168
      %v1415 = vmul.f32 %v1400, %v1172
      %v1416 = vmul.f32 %v1404, %v1168
      %v1417 = vmul.f32 %v1404, %v1172
      %v1418 = vmul.f32 %v1408, %v1168
      %v1419 = vmul.f32 %v1408, %v1172
      %v1420 = vmul.f32 %v1412, %v1168
      %v1421 = vmul.f32 %v1412, %v1172
      %1430 = vrot.lane.b32.xlu0 %v1414, 114
      %v1431 = vpop.permute.xlu0 %1430
      %1432 = vrot.lane.b32.xlu0 %v1415, 114
      %v1433 = vpop.permute.xlu0 %1432
      %1434 = vrot.lane.b32.xlu0 %v1416, 114
      %v1435 = vpop.permute.xlu0 %1434
      %1436 = vrot.lane.b32.xlu0 %v1417, 114
      %v1437 = vpop.permute.xlu0 %1436
      %1438 = vrot.lane.b32.xlu0 %v1418, 114
      %v1439 = vpop.permute.xlu0 %1438
      %1440 = vrot.lane.b32.xlu0 %v1419, 114
      %v1441 = vpop.permute.xlu0 %1440
      %1442 = vrot.lane.b32.xlu0 %v1420, 114
      %v1443 = vpop.permute.xlu0 %1442
      %1444 = vrot.lane.b32.xlu0 %v1421, 114
      %v1445 = vpop.permute.xlu0 %1444
      %vm1446 = vcmask 932864
      %v1447 = vsel %vm1446, %v1431, %v1433
      %v1448 = vsel %vm1446, %v1435, %v1437
      %v1449 = vsel %vm1446, %v1439, %v1441
      %v1450 = vsel %vm1446, %v1443, %v1445
      %v1459 = vadd.f32 %v1390, %v1447
      %v1460 = vadd.f32 %v1391, %v1433
      %v1461 = vadd.f32 %v1392, %v1448
      %v1462 = vadd.f32 %v1393, %v1437
      %v1463 = vadd.f32 %v1394, %v1449
      %v1464 = vadd.f32 %v1395, %v1441
      %v1465 = vadd.f32 %v1396, %v1450
      %v1466 = vadd.f32 %v1397, %v1445
      %1467 = vset.pattern.permute.xlu0 5
      %1468 = vperm.xlu0 %1467, %v206
      %v1469 = vpop.permute.xlu0 %1468
      %1471 = vset.pattern.permute.xlu0 5
      %1472 = vperm.xlu0 %1471, %v207
      %v1473 = vpop.permute.xlu0 %1472
      %1475 = vset.pattern.permute.xlu0 5
      %1476 = vperm.xlu0 %1475, %v208
      %v1477 = vpop.permute.xlu0 %1476
      %1479 = vset.pattern.permute.xlu0 5
      %1480 = vperm.xlu0 %1479, %v209
      %v1481 = vpop.permute.xlu0 %1480
      %v1483 = vmul.f32 %v1469, %v1168
      %v1484 = vmul.f32 %v1469, %v1172
      %v1485 = vmul.f32 %v1473, %v1168
      %v1486 = vmul.f32 %v1473, %v1172
      %v1487 = vmul.f32 %v1477, %v1168
      %v1488 = vmul.f32 %v1477, %v1172
      %v1489 = vmul.f32 %v1481, %v1168
      %v1490 = vmul.f32 %v1481, %v1172
      %1499 = vrot.lane.b32.xlu0 %v1483, 113
      %v1500 = vpop.permute.xlu0 %1499
      %1501 = vrot.lane.b32.xlu0 %v1484, 113
      %v1502 = vpop.permute.xlu0 %1501
      %1503 = vrot.lane.b32.xlu0 %v1485, 113
      %v1504 = vpop.permute.xlu0 %1503
      %1505 = vrot.lane.b32.xlu0 %v1486, 113
      %v1506 = vpop.permute.xlu0 %1505
      %1507 = vrot.lane.b32.xlu0 %v1487, 113
      %v1508 = vpop.permute.xlu0 %1507
      %1509 = vrot.lane.b32.xlu0 %v1488, 113
      %v1510 = vpop.permute.xlu0 %1509
      %1511 = vrot.lane.b32.xlu0 %v1489, 113
      %v1512 = vpop.permute.xlu0 %1511
      %1513 = vrot.lane.b32.xlu0 %v1490, 113
      %v1514 = vpop.permute.xlu0 %1513
      %vm1515 = vcmask 924672
      %v1516 = vsel %vm1515, %v1500, %v1502
      %v1517 = vsel %vm1515, %v1504, %v1506
      %v1518 = vsel %vm1515, %v1508, %v1510
      %v1519 = vsel %vm1515, %v1512, %v1514
      %v1528 = vadd.f32 %v1459, %v1516
      %v1529 = vadd.f32 %v1460, %v1502
      %v1530 = vadd.f32 %v1461, %v1517
      %v1531 = vadd.f32 %v1462, %v1506
      %v1532 = vadd.f32 %v1463, %v1518
      %v1533 = vadd.f32 %v1464, %v1510
      %v1534 = vadd.f32 %v1465, %v1519
      %v1535 = vadd.f32 %v1466, %v1514
      %1536 = vset.pattern.permute.xlu0 6
      %1537 = vperm.xlu0 %1536, %v206
      %v1538 = vpop.permute.xlu0 %1537
      %1540 = vset.pattern.permute.xlu0 6
      %1541 = vperm.xlu0 %1540, %v207
      %v1542 = vpop.permute.xlu0 %1541
      %1544 = vset.pattern.permute.xlu0 6
      %1545 = vperm.xlu0 %1544, %v208
      %v1546 = vpop.permute.xlu0 %1545
      %1548 = vset.pattern.permute.xlu0 6
      %1549 = vperm.xlu0 %1548, %v209
      %v1550 = vpop.permute.xlu0 %1549
      %v1552 = vmul.f32 %v1538, %v1168
      %v1553 = vmul.f32 %v1538, %v1172
      %v1554 = vmul.f32 %v1542, %v1168
      %v1555 = vmul.f32 %v1542, %v1172
      %v1556 = vmul.f32 %v1546, %v1168
      %v1557 = vmul.f32 %v1546, %v1172
      %v1558 = vmul.f32 %v1550, %v1168
      %v1559 = vmul.f32 %v1550, %v1172
      %1568 = vrot.lane.b32.xlu0 %v1552, 102
      %v1569 = vpop.permute.xlu0 %1568
      %1570 = vrot.lane.b32.xlu0 %v1553, 102
      %v1571 = vpop.permute.xlu0 %1570
      %1572 = vrot.lane.b32.xlu0 %v1554, 102
      %v1573 = vpop.permute.xlu0 %1572
      %1574 = vrot.lane.b32.xlu0 %v1555, 102
      %v1575 = vpop.permute.xlu0 %1574
      %1576 = vrot.lane.b32.xlu0 %v1556, 102
      %v1577 = vpop.permute.xlu0 %1576
      %1578 = vrot.lane.b32.xlu0 %v1557, 102
      %v1579 = vpop.permute.xlu0 %1578
      %1580 = vrot.lane.b32.xlu0 %v1558, 102
      %v1581 = vpop.permute.xlu0 %1580
      %1582 = vrot.lane.b32.xlu0 %v1559, 102
      %v1583 = vpop.permute.xlu0 %1582
      %vm1584 = vcmask 834560
      %v1585 = vsel %vm1584, %v1569, %v1571
      %v1586 = vsel %vm1584, %v1573, %v1575
      %v1587 = vsel %vm1584, %v1577, %v1579
      %v1588 = vsel %vm1584, %v1581, %v1583
      %v1597 = vadd.f32 %v1528, %v1585
      %v1598 = vadd.f32 %v1529, %v1571
      %v1599 = vadd.f32 %v1530, %v1586
      %v1600 = vadd.f32 %v1531, %v1575
      %v1601 = vadd.f32 %v1532, %v1587
      %v1602 = vadd.f32 %v1533, %v1579
      %v1603 = vadd.f32 %v1534, %v1588
      %v1604 = vadd.f32 %v1535, %v1583
      %1605 = vset.pattern.permute.xlu0 7
      %1606 = vperm.xlu0 %1605, %v206
      %v1607 = vpop.permute.xlu0 %1606
      %1609 = vset.pattern.permute.xlu0 7
      %1610 = vperm.xlu0 %1609, %v207
      %v1611 = vpop.permute.xlu0 %1610
      %1613 = vset.pattern.permute.xlu0 7
      %1614 = vperm.xlu0 %1613, %v208
      %v1615 = vpop.permute.xlu0 %1614
      %1617 = vset.pattern.permute.xlu0 7
      %1618 = vperm.xlu0 %1617, %v209
      %v1619 = vpop.permute.xlu0 %1618
      %v1621 = vmul.f32 %v1607, %v1168
      %v1622 = vmul.f32 %v1607, %v1172
      %v1623 = vmul.f32 %v1611, %v1168
      %v1624 = vmul.f32 %v1611, %v1172
      %v1625 = vmul.f32 %v1615, %v1168
      %v1626 = vmul.f32 %v1615, %v1172
      %v1627 = vmul.f32 %v1619, %v1168
      %v1628 = vmul.f32 %v1619, %v1172
      %1637 = vrot.lane.b32.xlu0 %v1621, 101
      %v1638 = vpop.permute.xlu0 %1637
      %1639 = vrot.lane.b32.xlu0 %v1622, 101
      %v1640 = vpop.permute.xlu0 %1639
      %1641 = vrot.lane.b32.xlu0 %v1623, 101
      %v1642 = vpop.permute.xlu0 %1641
      %1643 = vrot.lane.b32.xlu0 %v1624, 101
      %v1644 = vpop.permute.xlu0 %1643
      %1645 = vrot.lane.b32.xlu0 %v1625, 101
      %v1646 = vpop.permute.xlu0 %1645
      %1647 = vrot.lane.b32.xlu0 %v1626, 101
      %v1648 = vpop.permute.xlu0 %1647
      %1649 = vrot.lane.b32.xlu0 %v1627, 101
      %v1650 = vpop.permute.xlu0 %1649
      %1651 = vrot.lane.b32.xlu0 %v1628, 101
      %v1652 = vpop.permute.xlu0 %1651
      %vm1653 = vcmask 826368
      %v1654 = vsel %vm1653, %v1638, %v1640
      %v1655 = vsel %vm1653, %v1642, %v1644
      %v1656 = vsel %vm1653, %v1646, %v1648
      %v1657 = vsel %vm1653, %v1650, %v1652
      %v1666 = vadd.f32 %v1597, %v1654
      %v1667 = vadd.f32 %v1598, %v1640
      %v1668 = vadd.f32 %v1599, %v1655
      %v1669 = vadd.f32 %v1600, %v1644
      %v1670 = vadd.f32 %v1601, %v1656
      %v1671 = vadd.f32 %v1602, %v1648
      %v1672 = vadd.f32 %v1603, %v1657
      %v1673 = vadd.f32 %v1604, %v1652
      %1674 = vset.pattern.permute.xlu0 8
      %1675 = vperm.xlu0 %1674, %v206
      %v1676 = vpop.permute.xlu0 %1675
      %1678 = vset.pattern.permute.xlu0 8
      %1679 = vperm.xlu0 %1678, %v207
      %v1680 = vpop.permute.xlu0 %1679
      %1682 = vset.pattern.permute.xlu0 8
      %1683 = vperm.xlu0 %1682, %v208
      %v1684 = vpop.permute.xlu0 %1683
      %1686 = vset.pattern.permute.xlu0 8
      %1687 = vperm.xlu0 %1686, %v209
      %v1688 = vpop.permute.xlu0 %1687
      %v1690 = vmul.f32 %v1676, %v1168
      %v1691 = vmul.f32 %v1676, %v1172
      %v1692 = vmul.f32 %v1680, %v1168
      %v1693 = vmul.f32 %v1680, %v1172
      %v1694 = vmul.f32 %v1684, %v1168
      %v1695 = vmul.f32 %v1684, %v1172
      %v1696 = vmul.f32 %v1688, %v1168
      %v1697 = vmul.f32 %v1688, %v1172
      %1706 = vrot.lane.b32.xlu0 %v1690, 100
      %v1707 = vpop.permute.xlu0 %1706
      %1708 = vrot.lane.b32.xlu0 %v1691, 100
      %v1709 = vpop.permute.xlu0 %1708
      %1710 = vrot.lane.b32.xlu0 %v1692, 100
      %v1711 = vpop.permute.xlu0 %1710
      %1712 = vrot.lane.b32.xlu0 %v1693, 100
      %v1713 = vpop.permute.xlu0 %1712
      %1714 = vrot.lane.b32.xlu0 %v1694, 100
      %v1715 = vpop.permute.xlu0 %1714
      %1716 = vrot.lane.b32.xlu0 %v1695, 100
      %v1717 = vpop.permute.xlu0 %1716
      %1718 = vrot.lane.b32.xlu0 %v1696, 100
      %v1719 = vpop.permute.xlu0 %1718
      %1720 = vrot.lane.b32.xlu0 %v1697, 100
      %v1721 = vpop.permute.xlu0 %1720
      %vm1722 = vcmask 818176
      %v1723 = vsel %vm1722, %v1707, %v1709
      %v1724 = vsel %vm1722, %v1711, %v1713
      %v1725 = vsel %vm1722, %v1715, %v1717
      %v1726 = vsel %vm1722, %v1719, %v1721
      %v1735 = vadd.f32 %v1666, %v1723
      %v1736 = vadd.f32 %v1667, %v1709
      %v1737 = vadd.f32 %v1668, %v1724
      %v1738 = vadd.f32 %v1669, %v1713
      %v1739 = vadd.f32 %v1670, %v1725
      %v1740 = vadd.f32 %v1671, %v1717
      %v1741 = vadd.f32 %v1672, %v1726
      %v1742 = vadd.f32 %v1673, %v1721
      %1743 = vst [vmem:[%s197] sm:$0xff] %v1735
      %vm1744 = vcmask 441344
      %1745 = vst.msk [vmem:[%s197 + $0x8] sm:$0xff] %vm1744, %v1736
      %1746 = vst [vmem:[%s197 + $0x10] sm:$0xff] %v1737
      %1747 = vst.msk [vmem:[%s197 + $0x18] sm:$0xff] %vm1744, %v1738
      %1748 = vst [vmem:[%s197 + $0x20] sm:$0xff] %v1739
      %1749 = vst.msk [vmem:[%s197 + $0x28] sm:$0xff] %vm1744, %v1740
      %1750 = vst [vmem:[%s197 + $0x30] sm:$0xff] %v1741
      %1751 = vst.msk [vmem:[%s197 + $0x38] sm:$0xff] %vm1744, %v1742
      %p1752 = scmp.lt.s32.totalorder %s15, 1
      %s1753 = scalar_select %p1752, %s15, 1
      %s1754 = smul.addr %s1753, 8
      %s1755 = smul.addr %s1754, 8
      %s1756 = scalar_lea.vmem %s4, %s1755
      // Predicated region
      $region37: #{model_tanh_forward.1} parent=35 // pred_check
        %p1757 = pneg %p122
      $region38: #{model_tanh_forward.1} parent=35 // pred_check_branch
        %1759 = sbr.rel (%p1757) target = $region40
      $region39: #{model_tanh_forward.1} parent=35 // pred_region
        _
      $region40: #{model_tanh_forward.1} parent=35 // pred_fallthru
        _
    $region36: #{model_tanh_forward.1} parent=5 // pred_fallthru
      _
    %p1760 = scmp.le.s32.totalorder 2, %s10
    // Predicated region
    $region41: #{model_tanh_forward.1} parent=5 // pred_check
      %p1761 = pneg %p1760
    $region42: #{model_tanh_forward.1} parent=5 // pred_check_branch
      %1763 = sbr.rel (%p1761) target = $region44
    $region43: #{model_tanh_forward.1} parent=5 // pred_region
      %s1764 = ssub.s32 %s10, 2
      // Predicated region
      $region45: #{model_tanh_forward.1} parent=43 // pred_check
        %p1765 = pneg %p128
      $region46: #{model_tanh_forward.1} parent=43 // pred_check_branch
        %1767 = sbr.rel (%p1765) target = $region48
      $region47: #{model_tanh_forward.1} parent=43 // pred_region
        %p1768 = scmp.lt.s32.totalorder %s16, 1
        %s1769 = scalar_select %p1768, %s16, 1
        %s1770 = smul.addr %s1769, 8
        %s1771 = smul.addr %s1770, 8
        %s1772 = scalar_lea.vmem %s4, %s1771
      $region48: #{model_tanh_forward.1} parent=43 // pred_fallthru
        _
    $region44: #{model_tanh_forward.1} parent=5 // pred_fallthru
      _
  $region6: #{model_tanh_forward.1} parent=0 // loop_footer
    %s14 = sadd.s32 1, %s10
  $region7: #{model_tanh_forward.1} parent=0 // loop_footer_branch
    %9 = sbr.rel target = $region3
  $region8: #{model_tanh_forward.1} parent=0 // loop_exit
    _

</llo_original>
